<compile_context>
chip_gen: v6e
topology: v6e:2x2x1
jax: 0.10.0
libtpu: 0.0.40
codegen_flags: <defaults>
</compile_context>

<pallas_src>
import numpy as np
import jax
import jax.numpy as jnp
from jax.experimental import pallas as pl
from jax.experimental.pallas import tpu as pltpu

# ---- hparams implied by the module (radii="[8]", latent_space_size=32) ------
RADII = [8]
RADIUS = min(RADII)
H_W = 2 * RADIUS + 1            # 17
C_IN = len(RADII)               # 1
IM_SIZE = H_W * H_W * C_IN      # 289
C_CONV = 4                      # Conv2d out channels
K = 3                           # Conv2d kernel size
OH = OW = H_W - K + 1           # 15  (stride 1, no padding)
PH = PW = OH // 2               # 7   (MaxPool2d(2, stride=2), floor mode)
FLAT_ENC = C_CONV * PH * PW     # 196 -> matches nn.Linear(196, latent)
LATENT = 32
N = 2

# ---- padded (lane / sublane aligned) sizes ----------------------------------
B_PAD = 8                       # sublane tile for f32
IM_PAD = 384                    # 289 -> 3*128
POOL_PAD = 256                  # 196 -> 2*128
LAT_PAD = 128                   # 32  -> 128
CONV_STACK = 4 * POOL_PAD       # four folded conv+pool candidates, stacked


# ------------------------------- Pallas kernel -------------------------------
def amphib_kernel(x_ref, a_ref, cb_ref, w1_ref, b1_ref, w2_ref, b2_ref,
                  dec_ref, lat_ref):
    # conv+pool fold: one GEMM against the stacked (IM_PAD, 4*POOL_PAD) matrix,
    # then max over the four 256-lane-aligned slices, + bias, ReLU (all f32).
    xb = x_ref[...].astype(jnp.bfloat16)                               # (8,384)
    y = jnp.dot(xb, a_ref[...], preferred_element_type=jnp.float32)    # (8,1024)
    pooled = jnp.maximum(jnp.maximum(y[:, 0:POOL_PAD],
                                     y[:, POOL_PAD:2 * POOL_PAD]),
                         jnp.maximum(y[:, 2 * POOL_PAD:3 * POOL_PAD],
                                     y[:, 3 * POOL_PAD:4 * POOL_PAD]))
    pooled = jnp.maximum(pooled + cb_ref[...], 0.0)                    # (8,256)

    # encoder_linear: Linear(196, latent) + ReLU
    lat = jnp.maximum(
        jnp.dot(pooled.astype(jnp.bfloat16), w1_ref[...],
                preferred_element_type=jnp.float32) + b1_ref[...], 0.0)  # (8,128)
    lat_ref[...] = lat

    # decoder: Linear(latent, im_size) + Sigmoid (exp on EUP, approx recip)
    d = jnp.dot(lat.astype(jnp.bfloat16), w2_ref[...],
                preferred_element_type=jnp.float32) + b2_ref[...]        # (8,384)
    dec_ref[...] = pl.reciprocal(1.0 + jnp.exp(-d), approx=True)


# ----------------------- host-side, one-time weight prep ---------------------
def build_conv_matrix(conv_w):
    """Toeplitz A s.t. (x_flat @ A)[n, oc*OH*OW + oh*OW + ow] == conv(x)."""
    A = np.zeros((C_IN * H_W * H_W, C_CONV * OH * OW), np.float32)
    for oc in range(C_CONV):
        for c in range(C_IN):
            for oh in range(OH):
                for ow in range(OW):
                    out_idx = oc * OH * OW + oh * OW + ow
                    for di in range(K):
                        for dj in range(K):
                            in_idx = c * H_W * H_W + (oh + di) * H_W + (ow + dj)
                            A[in_idx, out_idx] = conv_w[oc, c, di, dj]
    return A


def build_pool_selectors():
    """Four 0/1 matrices; max over the four GEMMs == MaxPool2d(2, stride=2)."""
    Ps = np.zeros((4, C_CONV * OH * OW, C_CONV * PH * PW), np.float32)
    for k, (di, dj) in enumerate([(0, 0), (0, 1), (1, 0), (1, 1)]):
        for oc in range(C_CONV):
            for i in range(PH):
                for j in range(PW):
                    Ps[k,
                       oc * OH * OW + (2 * i + di) * OW + (2 * j + dj),
                       oc * PH * PW + i * PW + j] = 1.0
    return Ps


def prepare_params(conv_w, conv_b, w1, b1, w2, b2):
    """Build folded / padded / bf16-cast weight tensors ONCE (device-resident)."""
    A = build_conv_matrix(np.asarray(conv_w))          # (289, 900)
    P = build_pool_selectors()                         # (4, 900, 196)
    Af = np.einsum('ij,kjl->kil', A, P)                # fold pool: (4, 289, 196)

    A_pad = np.zeros((IM_PAD, CONV_STACK), np.float32)
    for k in range(4):
        A_pad[:IM_SIZE, k * POOL_PAD:k * POOL_PAD + FLAT_ENC] = Af[k]

    cb_pad = np.zeros((1, POOL_PAD), np.float32)
    cb_pad[0, :FLAT_ENC] = np.repeat(np.asarray(conv_b), PH * PW)

    w1_pad = np.zeros((POOL_PAD, LAT_PAD), np.float32)
    w1_pad[:FLAT_ENC, :LATENT] = np.asarray(w1).T
    b1_pad = np.zeros((1, LAT_PAD), np.float32)
    b1_pad[0, :LATENT] = np.asarray(b1)

    w2_pad = np.zeros((LAT_PAD, IM_PAD), np.float32)
    w2_pad[:LATENT, :IM_SIZE] = np.asarray(w2).T
    b2_pad = np.zeros((1, IM_PAD), np.float32)
    b2_pad[0, :IM_SIZE] = np.asarray(b2)

    return (jnp.asarray(A_pad, jnp.bfloat16),   # bf16 weights, f32 accumulate
            jnp.asarray(cb_pad, jnp.float32),
            jnp.asarray(w1_pad, jnp.bfloat16),
            jnp.asarray(b1_pad, jnp.float32),
            jnp.asarray(w2_pad, jnp.bfloat16),
            jnp.asarray(b2_pad, jnp.float32))


# ---------------------------------- forward ----------------------------------
@jax.jit
def amphib_forward(x, a, cb, w1t, b1_, w2t, b2_):
    n = x.shape[0]
    x_flat = x.reshape(n, IM_SIZE).astype(jnp.float32)
    x_pad = jnp.pad(x_flat, ((0, B_PAD - n), (0, IM_PAD - IM_SIZE)))

    # Single invocation (everything fits VMEM: ~1 MB weights + ~50 KB act).
    # For large batches, add a batch grid with constant index_maps on the
    # weights (resident) and dimension_semantics=("parallel",) for v7x's 2 TCs.
    dec_pad, lat_pad = pl.pallas_call(
        amphib_kernel,
        out_shape=(jax.ShapeDtypeStruct((B_PAD, IM_PAD), jnp.float32),
                   jax.ShapeDtypeStruct((B_PAD, LAT_PAD), jnp.float32)),
        in_specs=[pl.BlockSpec(memory_space=pltpu.MemorySpace.VMEM)] * 7,
        out_specs=(pl.BlockSpec(memory_space=pltpu.MemorySpace.VMEM),
                   pl.BlockSpec(memory_space=pltpu.MemorySpace.VMEM)),
    )(x_pad, a, cb, w1t, b1_, w2t, b2_)

    decoded = dec_pad[:n, :IM_SIZE].reshape(x.shape)   # decoded.view(final_view)
    latent = lat_pad[:n, :LATENT]
    return decoded, latent


# ------------------------ pure-JAX reference (checking) -----------------------
def reference(x, conv_w, conv_b, w1, b1, w2, b2):
    hp = jax.lax.Precision.HIGHEST
    z = jax.lax.conv_general_dilated(
        x, conv_w, (1, 1), 'VALID',
        dimension_numbers=('NCHW', 'OIHW', 'NCHW'), precision=hp)
    z = jnp.maximum(z + conv_b[None, :, None, None], 0.0)
    pooled = jax.lax.reduce_window(z, -jnp.inf, jax.lax.max,
                                   (1, 1, 2, 2), (1, 1, 2, 2), 'VALID')
    flat = pooled.reshape(x.shape[0], -1)                      # (N, 196)
    lat = jnp.maximum(jnp.dot(flat, w1.T, precision=hp) + b1, 0.0)
    dec = jax.nn.sigmoid(jnp.dot(lat, w2.T, precision=hp) + b2)
    return dec.reshape(x.shape), lat


if __name__ == "__main__":
    key = jax.random.PRNGKey(0)
    kx, k1, k2, k3, k4, k5, k6 = jax.random.split(key, 7)

    x = jax.random.normal(kx, (N, C_IN, H_W, H_W), jnp.float32)
    conv_w = 0.2 * jax.random.normal(k1, (C_CONV, C_IN, K, K), jnp.float32)
    conv_b = 0.1 * jax.random.normal(k2, (C_CONV,), jnp.float32)
    w1 = 0.1 * jax.random.normal(k3, (LATENT, FLAT_ENC), jnp.float32)
    b1 = 0.1 * jax.random.normal(k4, (LATENT,), jnp.float32)
    w2 = 0.1 * jax.random.normal(k5, (IM_SIZE, LATENT), jnp.float32)
    b2 = 0.1 * jax.random.normal(k6, (IM_SIZE,), jnp.float32)

    # Weight prep happens ONCE; the jitted forward only touches device arrays.
    params = prepare_params(conv_w, conv_b, w1, b1, w2, b2)

    decoded, latent = amphib_forward(x, *params)
    jax.block_until_ready(decoded)
    jax.block_until_ready(latent)

    dec_ref, lat_ref = reference(x, conv_w, conv_b, w1, b1, w2, b2)
    assert decoded.shape == x.shape and latent.shape == (N, LATENT)
    assert jnp.allclose(decoded, dec_ref, atol=2e-2, rtol=2e-2)
    assert jnp.allclose(latent, lat_ref, atol=2e-2, rtol=2e-2)

    print("KERNEL_OK")
</pallas_src>

<mosaic_0001>
module attributes {stable_mosaic.version = 11 : i64} {
  func.func @amphib_kernel(%arg0: memref<8x384xf32, #tpu.memory_space<vmem>>, %arg1: memref<384x1024xbf16, #tpu.memory_space<vmem>>, %arg2: memref<1x256xf32, #tpu.memory_space<vmem>>, %arg3: memref<256x128xbf16, #tpu.memory_space<vmem>>, %arg4: memref<1x128xf32, #tpu.memory_space<vmem>>, %arg5: memref<128x384xbf16, #tpu.memory_space<vmem>>, %arg6: memref<1x384xf32, #tpu.memory_space<vmem>>, %arg7: memref<8x384xf32, #tpu.memory_space<vmem>>, %arg8: memref<8x128xf32, #tpu.memory_space<vmem>>) attributes {dimension_semantics = [], scalar_prefetch = 0 : i64, scratch_operands = 0 : i64, tpu.core_type = #tpu.core_type<tc>} {
    %c0 = arith.constant 0 : index
    %c0_0 = arith.constant 0 : index
    %0 = vector.load %arg0[%c0, %c0_0] : memref<8x384xf32, #tpu.memory_space<vmem>>, vector<8x384xf32>
    %1 = arith.truncf %0 : vector<8x384xf32> to vector<8x384xbf16>
    %c0_1 = arith.constant 0 : index
    %c0_2 = arith.constant 0 : index
    %2 = vector.load %arg1[%c0_1, %c0_2] : memref<384x1024xbf16, #tpu.memory_space<vmem>>, vector<384x1024xbf16>
    %cst = arith.constant dense<0.000000e+00> : vector<8x1024xf32>
    %3 = tpu.matmul %1, %2, %cst {dimension_numbers = #tpu.dot_dimension_numbers<[1], [0], [0], [1], [0, 0, 1, 1], [], []>} : vector<8x384xbf16>, vector<384x1024xbf16>, vector<8x1024xf32> -> vector<8x1024xf32>
    %4 = vector.extract_strided_slice %3 {offsets = [0, 0], sizes = [8, 256], strides = [1, 1]} : vector<8x1024xf32> to vector<8x256xf32>
    %5 = vector.extract_strided_slice %3 {offsets = [0, 256], sizes = [8, 256], strides = [1, 1]} : vector<8x1024xf32> to vector<8x256xf32>
    %6 = arith.maximumf %4, %5 : vector<8x256xf32>
    %7 = vector.extract_strided_slice %3 {offsets = [0, 512], sizes = [8, 256], strides = [1, 1]} : vector<8x1024xf32> to vector<8x256xf32>
    %8 = vector.extract_strided_slice %3 {offsets = [0, 768], sizes = [8, 256], strides = [1, 1]} : vector<8x1024xf32> to vector<8x256xf32>
    %9 = arith.maximumf %7, %8 : vector<8x256xf32>
    %10 = arith.maximumf %6, %9 : vector<8x256xf32>
    %c0_3 = arith.constant 0 : index
    %c0_4 = arith.constant 0 : index
    %11 = vector.load %arg2[%c0_3, %c0_4] : memref<1x256xf32, #tpu.memory_space<vmem>>, vector<1x256xf32>
    %12 = vector.broadcast %11 : vector<1x256xf32> to vector<8x256xf32>
    %13 = arith.addf %10, %12 : vector<8x256xf32>
    %cst_5 = arith.constant 0.000000e+00 : f32
    %14 = vector.broadcast %cst_5 : f32 to vector<8x256xf32>
    %15 = arith.maximumf %13, %14 : vector<8x256xf32>
    %16 = arith.truncf %15 : vector<8x256xf32> to vector<8x256xbf16>
    %c0_6 = arith.constant 0 : index
    %c0_7 = arith.constant 0 : index
    %17 = vector.load %arg3[%c0_6, %c0_7] : memref<256x128xbf16, #tpu.memory_space<vmem>>, vector<256x128xbf16>
    %cst_8 = arith.constant dense<0.000000e+00> : vector<8x128xf32>
    %18 = tpu.matmul %16, %17, %cst_8 {dimension_numbers = #tpu.dot_dimension_numbers<[1], [0], [0], [1], [0, 0, 1, 1], [], []>} : vector<8x256xbf16>, vector<256x128xbf16>, vector<8x128xf32> -> vector<8x128xf32>
    %c0_9 = arith.constant 0 : index
    %c0_10 = arith.constant 0 : index
    %19 = vector.load %arg4[%c0_9, %c0_10] : memref<1x128xf32, #tpu.memory_space<vmem>>, vector<1x128xf32>
    %20 = vector.broadcast %19 : vector<1x128xf32> to vector<8x128xf32>
    %21 = arith.addf %18, %20 : vector<8x128xf32>
    %cst_11 = arith.constant 0.000000e+00 : f32
    %22 = vector.broadcast %cst_11 : f32 to vector<8x128xf32>
    %23 = arith.maximumf %21, %22 : vector<8x128xf32>
    %c0_12 = arith.constant 0 : index
    %c0_13 = arith.constant 0 : index
    %24 = vector.load %arg8[%c0_12, %c0_13] : memref<8x128xf32, #tpu.memory_space<vmem>>, vector<8x128xf32>
    tpu.vector_store %arg8[%c0_12, %c0_13], %23 {strides = array<i32>} : memref<8x128xf32, #tpu.memory_space<vmem>>, vector<8x128xf32>,
    %25 = arith.truncf %23 : vector<8x128xf32> to vector<8x128xbf16>
    %c0_14 = arith.constant 0 : index
    %c0_15 = arith.constant 0 : index
    %26 = vector.load %arg5[%c0_14, %c0_15] : memref<128x384xbf16, #tpu.memory_space<vmem>>, vector<128x384xbf16>
    %cst_16 = arith.constant dense<0.000000e+00> : vector<8x384xf32>
    %27 = tpu.matmul %25, %26, %cst_16 {dimension_numbers = #tpu.dot_dimension_numbers<[1], [0], [0], [1], [0, 0, 1, 1], [], []>} : vector<8x128xbf16>, vector<128x384xbf16>, vector<8x384xf32> -> vector<8x384xf32>
    %c0_17 = arith.constant 0 : index
    %c0_18 = arith.constant 0 : index
    %28 = vector.load %arg6[%c0_17, %c0_18] : memref<1x384xf32, #tpu.memory_space<vmem>>, vector<1x384xf32>
    %29 = vector.broadcast %28 : vector<1x384xf32> to vector<8x384xf32>
    %30 = arith.addf %27, %29 : vector<8x384xf32>
    %cst_19 = arith.constant 0.000000e+00 : f32
    %31 = vector.broadcast %cst_19 : f32 to vector<8x384xf32>
    %32 = arith.subf %31, %30 : vector<8x384xf32>
    %33 = math.exp %32 : vector<8x384xf32>
    %cst_20 = arith.constant 1.000000e+00 : f32
    %34 = vector.broadcast %cst_20 : f32 to vector<8x384xf32>
    %35 = arith.addf %34, %33 : vector<8x384xf32>
    %36 = tpu.reciprocal %35 {approx = true} : vector<8x384xf32> -> vector<8x384xf32>
    %c0_21 = arith.constant 0 : index
    %c0_22 = arith.constant 0 : index
    %37 = vector.load %arg7[%c0_21, %c0_22] : memref<8x384xf32, #tpu.memory_space<vmem>>, vector<8x384xf32>
    tpu.vector_store %arg7[%c0_21, %c0_22], %36 {strides = array<i32>} : memref<8x384xf32, #tpu.memory_space<vmem>>, vector<8x384xf32>,
    return
  }
}

</mosaic_0001>

<llo_original>
// kernel: amphib_forward.1
$region0: #{amphib_forward.1}
  #allocation0 [shape = 'u32[]', space=smem, size = 0x4, offset = 0x4, fixed_abs, tag = 'smem constant byte address 0x4 - core index']
  #allocation1 [shape = 'u32[144,128]{1,0:T(1,128)}', space=vmem, size = 0x12000, scoped, tag = 'internal scratch']
  %s0 = inlined_call_operand.vmem [shape: f32[8,384], index: 0, kind: input, shape index: {}]
  %s1 = inlined_call_operand.hbm [shape: bf16[384,1024], index: 1, kind: input, shape index: {}]
  %s2 = inlined_call_operand.vmem [shape: f32[1,256], index: 2, kind: input, shape index: {}]
  %s3 = inlined_call_operand.vmem [shape: bf16[256,128], index: 3, kind: input, shape index: {}]
  %s4 = inlined_call_operand.vmem [shape: f32[1,128], index: 4, kind: input, shape index: {}]
  %s5 = inlined_call_operand.hbm [shape: bf16[128,384], index: 5, kind: input, shape index: {}]
  %s6 = inlined_call_operand.vmem [shape: f32[1,384], index: 6, kind: input, shape index: {}]
  %s7 = inlined_call_operand.vmem [shape: f32[8,384], index: 7, kind: output, shape index: {0}]
  %s8 = inlined_call_operand.vmem [shape: f32[8,128], index: 8, kind: output, shape index: {1}]
  %9 = xla_tuple %s7, %s8
  %s10 = sld [smem:[#allocation0]]
  $region54: #{amphib_forward.1} parent=0
    _
  %s12 = ssub.s32 1, %s10
  %s13 = scalar_select 0, %s12, %s10
  $region1: #{amphib_forward.1} parent=0
    #allocation2 [shape = 'u8[786432]{0}', space=vmem, size = 0xc0000, scoped, tag = 'input window, operand 1, single buffered']
    #allocation3 [shape = 's32[1]{0}', space=sflag, size = 0x4, scoped, tag = 'scoped memory for amphib_forward.1']
    #allocation4 [shape = 'u8[98304]{0}', space=vmem, size = 0x18000, scoped, tag = 'input window, operand 5, single buffered']
    #allocation5 [shape = 's32[1]{0}', space=sflag, size = 0x4, scoped, tag = 'scoped memory for amphib_forward.1']
    %14 = vsyncpa [#allocation3], 0
    %15 = vsyncpa [#allocation5], 0
    // Predicated region
    $region2: #{amphib_forward.1} parent=1 // pred_check
      _
    $region3: #{amphib_forward.1} parent=1 // pred_check_branch
      %17 = sbr.rel (0) target = $region5
    $region4: #{amphib_forward.1} parent=1 // pred_region
      _
    $region5: #{amphib_forward.1} parent=1 // pred_fallthru
      _
    // Predicated region
    $region6: #{amphib_forward.1} parent=1 // pred_check
      _
    $region7: #{amphib_forward.1} parent=1 // pred_check_branch
      %19 = sbr.rel (0) target = $region9
    $region8: #{amphib_forward.1} parent=1 // pred_region
      %s21 = ssub.s32 24576, 24576
      %22 = vsyncadd [#allocation3], %s21
      %s23 = sshll.u32 [#allocation2], 4
      %s24 = int_to_ptr.vmem [resolvable:$true] %s23
      %29 = dma.hbm_to_vmem [thread:$0]  %s1, 24576, %s24, [#allocation3], 512, 512, 32
    $region9: #{amphib_forward.1} parent=1 // pred_fallthru
      _
    // Predicated region
    $region10: #{amphib_forward.1} parent=1 // pred_check
      _
    $region11: #{amphib_forward.1} parent=1 // pred_check_branch
      %31 = sbr.rel (0) target = $region13
    $region12: #{amphib_forward.1} parent=1 // pred_region
      _
    $region13: #{amphib_forward.1} parent=1 // pred_fallthru
      _
    // Predicated region
    $region14: #{amphib_forward.1} parent=1 // pred_check
      _
    $region15: #{amphib_forward.1} parent=1 // pred_check_branch
      %33 = sbr.rel (0) target = $region17
    $region16: #{amphib_forward.1} parent=1 // pred_region
      _
    $region17: #{amphib_forward.1} parent=1 // pred_fallthru
      _
    // Predicated region
    $region18: #{amphib_forward.1} parent=1 // pred_check
      _
    $region19: #{amphib_forward.1} parent=1 // pred_check_branch
      %35 = sbr.rel (0) target = $region21
    $region20: #{amphib_forward.1} parent=1 // pred_region
      _
    $region21: #{amphib_forward.1} parent=1 // pred_fallthru
      _
    // Predicated region
    $region22: #{amphib_forward.1} parent=1 // pred_check
      _
    $region23: #{amphib_forward.1} parent=1 // pred_check_branch
      %37 = sbr.rel (0) target = $region25
    $region24: #{amphib_forward.1} parent=1 // pred_region
      %s39 = ssub.s32 3072, 3072
      %40 = vsyncadd [#allocation5], %s39
      %s41 = sshll.u32 [#allocation4], 4
      %s42 = int_to_ptr.vmem [resolvable:$true] %s41
      %47 = dma.hbm_to_vmem [thread:$0]  %s5, 3072, %s42, [#allocation5], 192, 192, 12
    $region25: #{amphib_forward.1} parent=1 // pred_fallthru
      _
    // Predicated region
    $region26: #{amphib_forward.1} parent=1 // pred_check
      _
    $region27: #{amphib_forward.1} parent=1 // pred_check_branch
      %49 = sbr.rel (0) target = $region29
    $region28: #{amphib_forward.1} parent=1 // pred_region
      _
    $region29: #{amphib_forward.1} parent=1 // pred_fallthru
      _
    // Predicated region
    $region30: #{amphib_forward.1} parent=1 // pred_check
      _
    $region31: #{amphib_forward.1} parent=1 // pred_check_branch
      %51 = sbr.rel (0) target = $region33
    $region32: #{amphib_forward.1} parent=1 // pred_region
      %52 = dma.done [#allocation3], 24576
    $region33: #{amphib_forward.1} parent=1 // pred_fallthru
      _
    // Predicated region
    $region34: #{amphib_forward.1} parent=1 // pred_check
      _
    $region35: #{amphib_forward.1} parent=1 // pred_check_branch
      %54 = sbr.rel (0) target = $region37
    $region36: #{amphib_forward.1} parent=1 // pred_region
      %55 = dma.done [#allocation5], 3072
    $region37: #{amphib_forward.1} parent=1 // pred_fallthru
      _
    %v57 = vld [vmem:[%s0] sm:$0xff]
    %v58 = vld [vmem:[%s0 + $0x8] sm:$0xff]
    %v59 = vld [vmem:[%s0 + $0x10] sm:$0xff]
    %v60 = vpack.c.bf16 %v57, %v57
    %v61 = vpack.c.bf16 %v58, %v58
    %v62 = vpack.c.bf16 %v59, %v59
    %v63 = vld [vmem:[#allocation2] sm:$0xff]
    %v64 = vld [vmem:[#allocation2 + $0x8] sm:$0xff]
    %v65 = vld [vmem:[#allocation2 + $0x10] sm:$0xff]
    %v66 = vld [vmem:[#allocation2 + $0x18] sm:$0xff]
    %v67 = vld [vmem:[#allocation2 + $0x20] sm:$0xff]
    %v68 = vld [vmem:[#allocation2 + $0x28] sm:$0xff]
    %v69 = vld [vmem:[#allocation2 + $0x30] sm:$0xff]
    %v70 = vld [vmem:[#allocation2 + $0x38] sm:$0xff]
    %v71 = vld [vmem:[#allocation2 + $0x40] sm:$0xff]
    %v72 = vld [vmem:[#allocation2 + $0x48] sm:$0xff]
    %v73 = vld [vmem:[#allocation2 + $0x50] sm:$0xff]
    %v74 = vld [vmem:[#allocation2 + $0x58] sm:$0xff]
    %v75 = vld [vmem:[#allocation2 + $0x60] sm:$0xff]
    %v76 = vld [vmem:[#allocation2 + $0x68] sm:$0xff]
    %v77 = vld [vmem:[#allocation2 + $0x70] sm:$0xff]
    %v78 = vld [vmem:[#allocation2 + $0x78] sm:$0xff]
    %v79 = vld [vmem:[#allocation2 + $0x80] sm:$0xff]
    %v80 = vld [vmem:[#allocation2 + $0x88] sm:$0xff]
    %v81 = vld [vmem:[#allocation2 + $0x90] sm:$0xff]
    %v82 = vld [vmem:[#allocation2 + $0x98] sm:$0xff]
    %v83 = vld [vmem:[#allocation2 + $0xa0] sm:$0xff]
    %v84 = vld [vmem:[#allocation2 + $0xa8] sm:$0xff]
    %v85 = vld [vmem:[#allocation2 + $0xb0] sm:$0xff]
    %v86 = vld [vmem:[#allocation2 + $0xb8] sm:$0xff]
    %v87 = vld [vmem:[#allocation2 + $0xc0] sm:$0xff]
    %v88 = vld [vmem:[#allocation2 + $0xc8] sm:$0xff]
    %v89 = vld [vmem:[#allocation2 + $0xd0] sm:$0xff]
    %v90 = vld [vmem:[#allocation2 + $0xd8] sm:$0xff]
    %v91 = vld [vmem:[#allocation2 + $0xe0] sm:$0xff]
    %v92 = vld [vmem:[#allocation2 + $0xe8] sm:$0xff]
    %v93 = vld [vmem:[#allocation2 + $0xf0] sm:$0xff]
    %v94 = vld [vmem:[#allocation2 + $0xf8] sm:$0xff]
    %v95 = vld [vmem:[#allocation2 + $0x100] sm:$0xff]
    %v96 = vld [vmem:[#allocation2 + $0x108] sm:$0xff]
    %v97 = vld [vmem:[#allocation2 + $0x110] sm:$0xff]
    %v98 = vld [vmem:[#allocation2 + $0x118] sm:$0xff]
    %v99 = vld [vmem:[#allocation2 + $0x120] sm:$0xff]
    %v100 = vld [vmem:[#allocation2 + $0x128] sm:$0xff]
    %v101 = vld [vmem:[#allocation2 + $0x130] sm:$0xff]
    %v102 = vld [vmem:[#allocation2 + $0x138] sm:$0xff]
    %v103 = vld [vmem:[#allocation2 + $0x140] sm:$0xff]
    %v104 = vld [vmem:[#allocation2 + $0x148] sm:$0xff]
    %v105 = vld [vmem:[#allocation2 + $0x150] sm:$0xff]
    %v106 = vld [vmem:[#allocation2 + $0x158] sm:$0xff]
    %v107 = vld [vmem:[#allocation2 + $0x160] sm:$0xff]
    %v108 = vld [vmem:[#allocation2 + $0x168] sm:$0xff]
    %v109 = vld [vmem:[#allocation2 + $0x170] sm:$0xff]
    %v110 = vld [vmem:[#allocation2 + $0x178] sm:$0xff]
    %v111 = vld [vmem:[#allocation2 + $0x180] sm:$0xff]
    %v112 = vld [vmem:[#allocation2 + $0x188] sm:$0xff]
    %v113 = vld [vmem:[#allocation2 + $0x190] sm:$0xff]
    %v114 = vld [vmem:[#allocation2 + $0x198] sm:$0xff]
    %v115 = vld [vmem:[#allocation2 + $0x1a0] sm:$0xff]
    %v116 = vld [vmem:[#allocation2 + $0x1a8] sm:$0xff]
    %v117 = vld [vmem:[#allocation2 + $0x1b0] sm:$0xff]
    %v118 = vld [vmem:[#allocation2 + $0x1b8] sm:$0xff]
    %v119 = vld [vmem:[#allocation2 + $0x1c0] sm:$0xff]
    %v120 = vld [vmem:[#allocation2 + $0x1c8] sm:$0xff]
    %v121 = vld [vmem:[#allocation2 + $0x1d0] sm:$0xff]
    %v122 = vld [vmem:[#allocation2 + $0x1d8] sm:$0xff]
    %v123 = vld [vmem:[#allocation2 + $0x1e0] sm:$0xff]
    %v124 = vld [vmem:[#allocation2 + $0x1e8] sm:$0xff]
    %v125 = vld [vmem:[#allocation2 + $0x1f0] sm:$0xff]
    %v126 = vld [vmem:[#allocation2 + $0x1f8] sm:$0xff]
    %v127 = vld [vmem:[#allocation2 + $0x200] sm:$0xff]
    %v128 = vld [vmem:[#allocation2 + $0x208] sm:$0xff]
    %v129 = vld [vmem:[#allocation2 + $0x210] sm:$0xff]
    %v130 = vld [vmem:[#allocation2 + $0x218] sm:$0xff]
    %v131 = vld [vmem:[#allocation2 + $0x220] sm:$0xff]
    %v132 = vld [vmem:[#allocation2 + $0x228] sm:$0xff]
    %v133 = vld [vmem:[#allocation2 + $0x230] sm:$0xff]
    %v134 = vld [vmem:[#allocation2 + $0x238] sm:$0xff]
    %v135 = vld [vmem:[#allocation2 + $0x240] sm:$0xff]
    %v136 = vld [vmem:[#allocation2 + $0x248] sm:$0xff]
    %v137 = vld [vmem:[#allocation2 + $0x250] sm:$0xff]
    %v138 = vld [vmem:[#allocation2 + $0x258] sm:$0xff]
    %v139 = vld [vmem:[#allocation2 + $0x260] sm:$0xff]
    %v140 = vld [vmem:[#allocation2 + $0x268] sm:$0xff]
    %v141 = vld [vmem:[#allocation2 + $0x270] sm:$0xff]
    %v142 = vld [vmem:[#allocation2 + $0x278] sm:$0xff]
    %v143 = vld [vmem:[#allocation2 + $0x280] sm:$0xff]
    %v144 = vld [vmem:[#allocation2 + $0x288] sm:$0xff]
    %v145 = vld [vmem:[#allocation2 + $0x290] sm:$0xff]
    %v146 = vld [vmem:[#allocation2 + $0x298] sm:$0xff]
    %v147 = vld [vmem:[#allocation2 + $0x2a0] sm:$0xff]
    %v148 = vld [vmem:[#allocation2 + $0x2a8] sm:$0xff]
    %v149 = vld [vmem:[#allocation2 + $0x2b0] sm:$0xff]
    %v150 = vld [vmem:[#allocation2 + $0x2b8] sm:$0xff]
    %v151 = vld [vmem:[#allocation2 + $0x2c0] sm:$0xff]
    %v152 = vld [vmem:[#allocation2 + $0x2c8] sm:$0xff]
    %v153 = vld [vmem:[#allocation2 + $0x2d0] sm:$0xff]
    %v154 = vld [vmem:[#allocation2 + $0x2d8] sm:$0xff]
    %v155 = vld [vmem:[#allocation2 + $0x2e0] sm:$0xff]
    %v156 = vld [vmem:[#allocation2 + $0x2e8] sm:$0xff]
    %v157 = vld [vmem:[#allocation2 + $0x2f0] sm:$0xff]
    %v158 = vld [vmem:[#allocation2 + $0x2f8] sm:$0xff]
    %v159 = vld [vmem:[#allocation2 + $0x300] sm:$0xff]
    %v160 = vld [vmem:[#allocation2 + $0x308] sm:$0xff]
    %v161 = vld [vmem:[#allocation2 + $0x310] sm:$0xff]
    %v162 = vld [vmem:[#allocation2 + $0x318] sm:$0xff]
    %v163 = vld [vmem:[#allocation2 + $0x320] sm:$0xff]
    %v164 = vld [vmem:[#allocation2 + $0x328] sm:$0xff]
    %v165 = vld [vmem:[#allocation2 + $0x330] sm:$0xff]
    %v166 = vld [vmem:[#allocation2 + $0x338] sm:$0xff]
    %v167 = vld [vmem:[#allocation2 + $0x340] sm:$0xff]
    %v168 = vld [vmem:[#allocation2 + $0x348] sm:$0xff]
    %v169 = vld [vmem:[#allocation2 + $0x350] sm:$0xff]
    %v170 = vld [vmem:[#allocation2 + $0x358] sm:$0xff]
    %v171 = vld [vmem:[#allocation2 + $0x360] sm:$0xff]
    %v172 = vld [vmem:[#allocation2 + $0x368] sm:$0xff]
    %v173 = vld [vmem:[#allocation2 + $0x370] sm:$0xff]
    %v174 = vld [vmem:[#allocation2 + $0x378] sm:$0xff]
    %v175 = vld [vmem:[#allocation2 + $0x380] sm:$0xff]
    %v176 = vld [vmem:[#allocation2 + $0x388] sm:$0xff]
    %v177 = vld [vmem:[#allocation2 + $0x390] sm:$0xff]
    %v178 = vld [vmem:[#allocation2 + $0x398] sm:$0xff]
    %v179 = vld [vmem:[#allocation2 + $0x3a0] sm:$0xff]
    %v180 = vld [vmem:[#allocation2 + $0x3a8] sm:$0xff]
    %v181 = vld [vmem:[#allocation2 + $0x3b0] sm:$0xff]
    %v182 = vld [vmem:[#allocation2 + $0x3b8] sm:$0xff]
    %v183 = vld [vmem:[#allocation2 + $0x3c0] sm:$0xff]
    %v184 = vld [vmem:[#allocation2 + $0x3c8] sm:$0xff]
    %v185 = vld [vmem:[#allocation2 + $0x3d0] sm:$0xff]
    %v186 = vld [vmem:[#allocation2 + $0x3d8] sm:$0xff]
    %v187 = vld [vmem:[#allocation2 + $0x3e0] sm:$0xff]
    %v188 = vld [vmem:[#allocation2 + $0x3e8] sm:$0xff]
    %v189 = vld [vmem:[#allocation2 + $0x3f0] sm:$0xff]
    %v190 = vld [vmem:[#allocation2 + $0x3f8] sm:$0xff]
    %v191 = vld [vmem:[#allocation2 + $0x400] sm:$0xff]
    %v192 = vld [vmem:[#allocation2 + $0x408] sm:$0xff]
    %v193 = vld [vmem:[#allocation2 + $0x410] sm:$0xff]
    %v194 = vld [vmem:[#allocation2 + $0x418] sm:$0xff]
    %v195 = vld [vmem:[#allocation2 + $0x420] sm:$0xff]
    %v196 = vld [vmem:[#allocation2 + $0x428] sm:$0xff]
    %v197 = vld [vmem:[#allocation2 + $0x430] sm:$0xff]
    %v198 = vld [vmem:[#allocation2 + $0x438] sm:$0xff]
    %v199 = vld [vmem:[#allocation2 + $0x440] sm:$0xff]
    %v200 = vld [vmem:[#allocation2 + $0x448] sm:$0xff]
    %v201 = vld [vmem:[#allocation2 + $0x450] sm:$0xff]
    %v202 = vld [vmem:[#allocation2 + $0x458] sm:$0xff]
    %v203 = vld [vmem:[#allocation2 + $0x460] sm:$0xff]
    %v204 = vld [vmem:[#allocation2 + $0x468] sm:$0xff]
    %v205 = vld [vmem:[#allocation2 + $0x470] sm:$0xff]
    %v206 = vld [vmem:[#allocation2 + $0x478] sm:$0xff]
    %v207 = vld [vmem:[#allocation2 + $0x480] sm:$0xff]
    %v208 = vld [vmem:[#allocation2 + $0x488] sm:$0xff]
    %v209 = vld [vmem:[#allocation2 + $0x490] sm:$0xff]
    %v210 = vld [vmem:[#allocation2 + $0x498] sm:$0xff]
    %v211 = vld [vmem:[#allocation2 + $0x4a0] sm:$0xff]
    %v212 = vld [vmem:[#allocation2 + $0x4a8] sm:$0xff]
    %v213 = vld [vmem:[#allocation2 + $0x4b0] sm:$0xff]
    %v214 = vld [vmem:[#allocation2 + $0x4b8] sm:$0xff]
    %v215 = vld [vmem:[#allocation2 + $0x4c0] sm:$0xff]
    %v216 = vld [vmem:[#allocation2 + $0x4c8] sm:$0xff]
    %v217 = vld [vmem:[#allocation2 + $0x4d0] sm:$0xff]
    %v218 = vld [vmem:[#allocation2 + $0x4d8] sm:$0xff]
    %v219 = vld [vmem:[#allocation2 + $0x4e0] sm:$0xff]
    %v220 = vld [vmem:[#allocation2 + $0x4e8] sm:$0xff]
    %v221 = vld [vmem:[#allocation2 + $0x4f0] sm:$0xff]
    %v222 = vld [vmem:[#allocation2 + $0x4f8] sm:$0xff]
    %v223 = vld [vmem:[#allocation2 + $0x500] sm:$0xff]
    %v224 = vld [vmem:[#allocation2 + $0x508] sm:$0xff]
    %v225 = vld [vmem:[#allocation2 + $0x510] sm:$0xff]
    %v226 = vld [vmem:[#allocation2 + $0x518] sm:$0xff]
    %v227 = vld [vmem:[#allocation2 + $0x520] sm:$0xff]
    %v228 = vld [vmem:[#allocation2 + $0x528] sm:$0xff]
    %v229 = vld [vmem:[#allocation2 + $0x530] sm:$0xff]
    %v230 = vld [vmem:[#allocation2 + $0x538] sm:$0xff]
    %v231 = vld [vmem:[#allocation2 + $0x540] sm:$0xff]
    %v232 = vld [vmem:[#allocation2 + $0x548] sm:$0xff]
    %v233 = vld [vmem:[#allocation2 + $0x550] sm:$0xff]
    %v234 = vld [vmem:[#allocation2 + $0x558] sm:$0xff]
    %v235 = vld [vmem:[#allocation2 + $0x560] sm:$0xff]
    %v236 = vld [vmem:[#allocation2 + $0x568] sm:$0xff]
    %v237 = vld [vmem:[#allocation2 + $0x570] sm:$0xff]
    %v238 = vld [vmem:[#allocation2 + $0x578] sm:$0xff]
    %v239 = vld [vmem:[#allocation2 + $0x580] sm:$0xff]
    %v240 = vld [vmem:[#allocation2 + $0x588] sm:$0xff]
    %v241 = vld [vmem:[#allocation2 + $0x590] sm:$0xff]
    %v242 = vld [vmem:[#allocation2 + $0x598] sm:$0xff]
    %v243 = vld [vmem:[#allocation2 + $0x5a0] sm:$0xff]
    %v244 = vld [vmem:[#allocation2 + $0x5a8] sm:$0xff]
    %v245 = vld [vmem:[#allocation2 + $0x5b0] sm:$0xff]
    %v246 = vld [vmem:[#allocation2 + $0x5b8] sm:$0xff]
    %v247 = vld [vmem:[#allocation2 + $0x5c0] sm:$0xff]
    %v248 = vld [vmem:[#allocation2 + $0x5c8] sm:$0xff]
    %v249 = vld [vmem:[#allocation2 + $0x5d0] sm:$0xff]
    %v250 = vld [vmem:[#allocation2 + $0x5d8] sm:$0xff]
    %v251 = vld [vmem:[#allocation2 + $0x5e0] sm:$0xff]
    %v252 = vld [vmem:[#allocation2 + $0x5e8] sm:$0xff]
    %v253 = vld [vmem:[#allocation2 + $0x5f0] sm:$0xff]
    %v254 = vld [vmem:[#allocation2 + $0x5f8] sm:$0xff]
    %v447 = vunpack.c.l.b16 %v63
    %v448 = vunpack.c.h.b16 %v63
    %v449 = vunpack.c.l.b16 %v64
    %v450 = vunpack.c.h.b16 %v64
    %v451 = vunpack.c.l.b16 %v65
    %v452 = vunpack.c.h.b16 %v65
    %v453 = vunpack.c.l.b16 %v66
    %v454 = vunpack.c.h.b16 %v66
    %v455 = vunpack.c.l.b16 %v67
    %v456 = vunpack.c.h.b16 %v67
    %v457 = vunpack.c.l.b16 %v68
    %v458 = vunpack.c.h.b16 %v68
    %v459 = vunpack.c.l.b16 %v69
    %v460 = vunpack.c.h.b16 %v69
    %v461 = vunpack.c.l.b16 %v70
    %v462 = vunpack.c.h.b16 %v70
    %v463 = vunpack.c.l.b16 %v71
    %v464 = vunpack.c.h.b16 %v71
    %v465 = vunpack.c.l.b16 %v72
    %v466 = vunpack.c.h.b16 %v72
    %v467 = vunpack.c.l.b16 %v73
    %v468 = vunpack.c.h.b16 %v73
    %v469 = vunpack.c.l.b16 %v74
    %v470 = vunpack.c.h.b16 %v74
    %v471 = vunpack.c.l.b16 %v75
    %v472 = vunpack.c.h.b16 %v75
    %v473 = vunpack.c.l.b16 %v76
    %v474 = vunpack.c.h.b16 %v76
    %v475 = vunpack.c.l.b16 %v77
    %v476 = vunpack.c.h.b16 %v77
    %v477 = vunpack.c.l.b16 %v78
    %v478 = vunpack.c.h.b16 %v78
    %v479 = vunpack.c.l.b16 %v79
    %v480 = vunpack.c.h.b16 %v79
    %v481 = vunpack.c.l.b16 %v80
    %v482 = vunpack.c.h.b16 %v80
    %v483 = vunpack.c.l.b16 %v81
    %v484 = vunpack.c.h.b16 %v81
    %v485 = vunpack.c.l.b16 %v82
    %v486 = vunpack.c.h.b16 %v82
    %v487 = vunpack.c.l.b16 %v83
    %v488 = vunpack.c.h.b16 %v83
    %v489 = vunpack.c.l.b16 %v84
    %v490 = vunpack.c.h.b16 %v84
    %v491 = vunpack.c.l.b16 %v85
    %v492 = vunpack.c.h.b16 %v85
    %v493 = vunpack.c.l.b16 %v86
    %v494 = vunpack.c.h.b16 %v86
    %v495 = vunpack.c.l.b16 %v87
    %v496 = vunpack.c.h.b16 %v87
    %v497 = vunpack.c.l.b16 %v88
    %v498 = vunpack.c.h.b16 %v88
    %v499 = vunpack.c.l.b16 %v89
    %v500 = vunpack.c.h.b16 %v89
    %v501 = vunpack.c.l.b16 %v90
    %v502 = vunpack.c.h.b16 %v90
    %v503 = vunpack.c.l.b16 %v91
    %v504 = vunpack.c.h.b16 %v91
    %v505 = vunpack.c.l.b16 %v92
    %v506 = vunpack.c.h.b16 %v92
    %v507 = vunpack.c.l.b16 %v93
    %v508 = vunpack.c.h.b16 %v93
    %v509 = vunpack.c.l.b16 %v94
    %v510 = vunpack.c.h.b16 %v94
    %v511 = vunpack.c.l.b16 %v95
    %v512 = vunpack.c.h.b16 %v95
    %v513 = vunpack.c.l.b16 %v96
    %v514 = vunpack.c.h.b16 %v96
    %v515 = vunpack.c.l.b16 %v97
    %v516 = vunpack.c.h.b16 %v97
    %v517 = vunpack.c.l.b16 %v98
    %v518 = vunpack.c.h.b16 %v98
    %v519 = vunpack.c.l.b16 %v99
    %v520 = vunpack.c.h.b16 %v99
    %v521 = vunpack.c.l.b16 %v100
    %v522 = vunpack.c.h.b16 %v100
    %v523 = vunpack.c.l.b16 %v101
    %v524 = vunpack.c.h.b16 %v101
    %v525 = vunpack.c.l.b16 %v102
    %v526 = vunpack.c.h.b16 %v102
    %v527 = vunpack.c.l.b16 %v103
    %v528 = vunpack.c.h.b16 %v103
    %v529 = vunpack.c.l.b16 %v104
    %v530 = vunpack.c.h.b16 %v104
    %v531 = vunpack.c.l.b16 %v105
    %v532 = vunpack.c.h.b16 %v105
    %v533 = vunpack.c.l.b16 %v106
    %v534 = vunpack.c.h.b16 %v106
    %v535 = vunpack.c.l.b16 %v107
    %v536 = vunpack.c.h.b16 %v107
    %v537 = vunpack.c.l.b16 %v108
    %v538 = vunpack.c.h.b16 %v108
    %v539 = vunpack.c.l.b16 %v109
    %v540 = vunpack.c.h.b16 %v109
    %v541 = vunpack.c.l.b16 %v110
    %v542 = vunpack.c.h.b16 %v110
    %v543 = vunpack.c.l.b16 %v111
    %v544 = vunpack.c.h.b16 %v111
    %v545 = vunpack.c.l.b16 %v112
    %v546 = vunpack.c.h.b16 %v112
    %v547 = vunpack.c.l.b16 %v113
    %v548 = vunpack.c.h.b16 %v113
    %v549 = vunpack.c.l.b16 %v114
    %v550 = vunpack.c.h.b16 %v114
    %v551 = vunpack.c.l.b16 %v115
    %v552 = vunpack.c.h.b16 %v115
    %v553 = vunpack.c.l.b16 %v116
    %v554 = vunpack.c.h.b16 %v116
    %v555 = vunpack.c.l.b16 %v117
    %v556 = vunpack.c.h.b16 %v117
    %v557 = vunpack.c.l.b16 %v118
    %v558 = vunpack.c.h.b16 %v118
    %v559 = vunpack.c.l.b16 %v119
    %v560 = vunpack.c.h.b16 %v119
    %v561 = vunpack.c.l.b16 %v120
    %v562 = vunpack.c.h.b16 %v120
    %v563 = vunpack.c.l.b16 %v121
    %v564 = vunpack.c.h.b16 %v121
    %v565 = vunpack.c.l.b16 %v122
    %v566 = vunpack.c.h.b16 %v122
    %v567 = vunpack.c.l.b16 %v123
    %v568 = vunpack.c.h.b16 %v123
    %v569 = vunpack.c.l.b16 %v124
    %v570 = vunpack.c.h.b16 %v124
    %v571 = vunpack.c.l.b16 %v125
    %v572 = vunpack.c.h.b16 %v125
    %v573 = vunpack.c.l.b16 %v126
    %v574 = vunpack.c.h.b16 %v126
    %v575 = vunpack.c.l.b16 %v127
    %v576 = vunpack.c.h.b16 %v127
    %v577 = vunpack.c.l.b16 %v128
    %v578 = vunpack.c.h.b16 %v128
    %v579 = vunpack.c.l.b16 %v129
    %v580 = vunpack.c.h.b16 %v129
    %v581 = vunpack.c.l.b16 %v130
    %v582 = vunpack.c.h.b16 %v130
    %v583 = vunpack.c.l.b16 %v131
    %v584 = vunpack.c.h.b16 %v131
    %v585 = vunpack.c.l.b16 %v132
    %v586 = vunpack.c.h.b16 %v132
    %v587 = vunpack.c.l.b16 %v133
    %v588 = vunpack.c.h.b16 %v133
    %v589 = vunpack.c.l.b16 %v134
    %v590 = vunpack.c.h.b16 %v134
    %v591 = vunpack.c.l.b16 %v135
    %v592 = vunpack.c.h.b16 %v135
    %v593 = vunpack.c.l.b16 %v136
    %v594 = vunpack.c.h.b16 %v136
    %v595 = vunpack.c.l.b16 %v137
    %v596 = vunpack.c.h.b16 %v137
    %v597 = vunpack.c.l.b16 %v138
    %v598 = vunpack.c.h.b16 %v138
    %v599 = vunpack.c.l.b16 %v139
    %v600 = vunpack.c.h.b16 %v139
    %v601 = vunpack.c.l.b16 %v140
    %v602 = vunpack.c.h.b16 %v140
    %v603 = vunpack.c.l.b16 %v141
    %v604 = vunpack.c.h.b16 %v141
    %v605 = vunpack.c.l.b16 %v142
    %v606 = vunpack.c.h.b16 %v142
    %v607 = vunpack.c.l.b16 %v143
    %v608 = vunpack.c.h.b16 %v143
    %v609 = vunpack.c.l.b16 %v144
    %v610 = vunpack.c.h.b16 %v144
    %v611 = vunpack.c.l.b16 %v145
    %v612 = vunpack.c.h.b16 %v145
    %v613 = vunpack.c.l.b16 %v146
    %v614 = vunpack.c.h.b16 %v146
    %v615 = vunpack.c.l.b16 %v147
    %v616 = vunpack.c.h.b16 %v147
    %v617 = vunpack.c.l.b16 %v148
    %v618 = vunpack.c.h.b16 %v148
    %v619 = vunpack.c.l.b16 %v149
    %v620 = vunpack.c.h.b16 %v149
    %v621 = vunpack.c.l.b16 %v150
    %v622 = vunpack.c.h.b16 %v150
    %v623 = vunpack.c.l.b16 %v151
    %v624 = vunpack.c.h.b16 %v151
    %v625 = vunpack.c.l.b16 %v152
    %v626 = vunpack.c.h.b16 %v152
    %v627 = vunpack.c.l.b16 %v153
    %v628 = vunpack.c.h.b16 %v153
    %v629 = vunpack.c.l.b16 %v154
    %v630 = vunpack.c.h.b16 %v154
    %v631 = vunpack.c.l.b16 %v155
    %v632 = vunpack.c.h.b16 %v155
    %v633 = vunpack.c.l.b16 %v156
    %v634 = vunpack.c.h.b16 %v156
    %v635 = vunpack.c.l.b16 %v157
    %v636 = vunpack.c.h.b16 %v157
    %v637 = vunpack.c.l.b16 %v158
    %v638 = vunpack.c.h.b16 %v158
    %v639 = vunpack.c.l.b16 %v159
    %v640 = vunpack.c.h.b16 %v159
    %v641 = vunpack.c.l.b16 %v160
    %v642 = vunpack.c.h.b16 %v160
    %v643 = vunpack.c.l.b16 %v161
    %v644 = vunpack.c.h.b16 %v161
    %v645 = vunpack.c.l.b16 %v162
    %v646 = vunpack.c.h.b16 %v162
    %v647 = vunpack.c.l.b16 %v163
    %v648 = vunpack.c.h.b16 %v163
    %v649 = vunpack.c.l.b16 %v164
    %v650 = vunpack.c.h.b16 %v164
    %v651 = vunpack.c.l.b16 %v165
    %v652 = vunpack.c.h.b16 %v165
    %v653 = vunpack.c.l.b16 %v166
    %v654 = vunpack.c.h.b16 %v166
    %v655 = vunpack.c.l.b16 %v167
    %v656 = vunpack.c.h.b16 %v167
    %v657 = vunpack.c.l.b16 %v168
    %v658 = vunpack.c.h.b16 %v168
    %v659 = vunpack.c.l.b16 %v169
    %v660 = vunpack.c.h.b16 %v169
    %v661 = vunpack.c.l.b16 %v170
    %v662 = vunpack.c.h.b16 %v170
    %v663 = vunpack.c.l.b16 %v171
    %v664 = vunpack.c.h.b16 %v171
    %v665 = vunpack.c.l.b16 %v172
    %v666 = vunpack.c.h.b16 %v172
    %v667 = vunpack.c.l.b16 %v173
    %v668 = vunpack.c.h.b16 %v173
    %v669 = vunpack.c.l.b16 %v174
    %v670 = vunpack.c.h.b16 %v174
    %v671 = vunpack.c.l.b16 %v175
    %v672 = vunpack.c.h.b16 %v175
    %v673 = vunpack.c.l.b16 %v176
    %v674 = vunpack.c.h.b16 %v176
    %v675 = vunpack.c.l.b16 %v177
    %v676 = vunpack.c.h.b16 %v177
    %v677 = vunpack.c.l.b16 %v178
    %v678 = vunpack.c.h.b16 %v178
    %v679 = vunpack.c.l.b16 %v179
    %v680 = vunpack.c.h.b16 %v179
    %v681 = vunpack.c.l.b16 %v180
    %v682 = vunpack.c.h.b16 %v180
    %v683 = vunpack.c.l.b16 %v181
    %v684 = vunpack.c.h.b16 %v181
    %v685 = vunpack.c.l.b16 %v182
    %v686 = vunpack.c.h.b16 %v182
    %v687 = vunpack.c.l.b16 %v183
    %v688 = vunpack.c.h.b16 %v183
    %v689 = vunpack.c.l.b16 %v184
    %v690 = vunpack.c.h.b16 %v184
    %v691 = vunpack.c.l.b16 %v185
    %v692 = vunpack.c.h.b16 %v185
    %v693 = vunpack.c.l.b16 %v186
    %v694 = vunpack.c.h.b16 %v186
    %v695 = vunpack.c.l.b16 %v187
    %v696 = vunpack.c.h.b16 %v187
    %v697 = vunpack.c.l.b16 %v188
    %v698 = vunpack.c.h.b16 %v188
    %v699 = vunpack.c.l.b16 %v189
    %v700 = vunpack.c.h.b16 %v189
    %v701 = vunpack.c.l.b16 %v190
    %v702 = vunpack.c.h.b16 %v190
    %v703 = vunpack.c.l.b16 %v191
    %v704 = vunpack.c.h.b16 %v191
    %v705 = vunpack.c.l.b16 %v192
    %v706 = vunpack.c.h.b16 %v192
    %v707 = vunpack.c.l.b16 %v193
    %v708 = vunpack.c.h.b16 %v193
    %v709 = vunpack.c.l.b16 %v194
    %v710 = vunpack.c.h.b16 %v194
    %v711 = vunpack.c.l.b16 %v195
    %v712 = vunpack.c.h.b16 %v195
    %v713 = vunpack.c.l.b16 %v196
    %v714 = vunpack.c.h.b16 %v196
    %v715 = vunpack.c.l.b16 %v197
    %v716 = vunpack.c.h.b16 %v197
    %v717 = vunpack.c.l.b16 %v198
    %v718 = vunpack.c.h.b16 %v198
    %v719 = vunpack.c.l.b16 %v199
    %v720 = vunpack.c.h.b16 %v199
    %v721 = vunpack.c.l.b16 %v200
    %v722 = vunpack.c.h.b16 %v200
    %v723 = vunpack.c.l.b16 %v201
    %v724 = vunpack.c.h.b16 %v201
    %v725 = vunpack.c.l.b16 %v202
    %v726 = vunpack.c.h.b16 %v202
    %v727 = vunpack.c.l.b16 %v203
    %v728 = vunpack.c.h.b16 %v203
    %v729 = vunpack.c.l.b16 %v204
    %v730 = vunpack.c.h.b16 %v204
    %v731 = vunpack.c.l.b16 %v205
    %v732 = vunpack.c.h.b16 %v205
    %v733 = vunpack.c.l.b16 %v206
    %v734 = vunpack.c.h.b16 %v206
    %v735 = vunpack.c.l.b16 %v207
    %v736 = vunpack.c.h.b16 %v207
    %v737 = vunpack.c.l.b16 %v208
    %v738 = vunpack.c.h.b16 %v208
    %v739 = vunpack.c.l.b16 %v209
    %v740 = vunpack.c.h.b16 %v209
    %v741 = vunpack.c.l.b16 %v210
    %v742 = vunpack.c.h.b16 %v210
    %v743 = vunpack.c.l.b16 %v211
    %v744 = vunpack.c.h.b16 %v211
    %v745 = vunpack.c.l.b16 %v212
    %v746 = vunpack.c.h.b16 %v212
    %v747 = vunpack.c.l.b16 %v213
    %v748 = vunpack.c.h.b16 %v213
    %v749 = vunpack.c.l.b16 %v214
    %v750 = vunpack.c.h.b16 %v214
    %v751 = vunpack.c.l.b16 %v215
    %v752 = vunpack.c.h.b16 %v215
    %v753 = vunpack.c.l.b16 %v216
    %v754 = vunpack.c.h.b16 %v216
    %v755 = vunpack.c.l.b16 %v217
    %v756 = vunpack.c.h.b16 %v217
    %v757 = vunpack.c.l.b16 %v218
    %v758 = vunpack.c.h.b16 %v218
    %v759 = vunpack.c.l.b16 %v219
    %v760 = vunpack.c.h.b16 %v219
    %v761 = vunpack.c.l.b16 %v220
    %v762 = vunpack.c.h.b16 %v220
    %v763 = vunpack.c.l.b16 %v221
    %v764 = vunpack.c.h.b16 %v221
    %v765 = vunpack.c.l.b16 %v222
    %v766 = vunpack.c.h.b16 %v222
    %v767 = vunpack.c.l.b16 %v223
    %v768 = vunpack.c.h.b16 %v223
    %v769 = vunpack.c.l.b16 %v224
    %v770 = vunpack.c.h.b16 %v224
    %v771 = vunpack.c.l.b16 %v225
    %v772 = vunpack.c.h.b16 %v225
    %v773 = vunpack.c.l.b16 %v226
    %v774 = vunpack.c.h.b16 %v226
    %v775 = vunpack.c.l.b16 %v227
    %v776 = vunpack.c.h.b16 %v227
    %v777 = vunpack.c.l.b16 %v228
    %v778 = vunpack.c.h.b16 %v228
    %v779 = vunpack.c.l.b16 %v229
    %v780 = vunpack.c.h.b16 %v229
    %v781 = vunpack.c.l.b16 %v230
    %v782 = vunpack.c.h.b16 %v230
    %v783 = vunpack.c.l.b16 %v231
    %v784 = vunpack.c.h.b16 %v231
    %v785 = vunpack.c.l.b16 %v232
    %v786 = vunpack.c.h.b16 %v232
    %v787 = vunpack.c.l.b16 %v233
    %v788 = vunpack.c.h.b16 %v233
    %v789 = vunpack.c.l.b16 %v234
    %v790 = vunpack.c.h.b16 %v234
    %v791 = vunpack.c.l.b16 %v235
    %v792 = vunpack.c.h.b16 %v235
    %v793 = vunpack.c.l.b16 %v236
    %v794 = vunpack.c.h.b16 %v236
    %v795 = vunpack.c.l.b16 %v237
    %v796 = vunpack.c.h.b16 %v237
    %v797 = vunpack.c.l.b16 %v238
    %v798 = vunpack.c.h.b16 %v238
    %v799 = vunpack.c.l.b16 %v239
    %v800 = vunpack.c.h.b16 %v239
    %v801 = vunpack.c.l.b16 %v240
    %v802 = vunpack.c.h.b16 %v240
    %v803 = vunpack.c.l.b16 %v241
    %v804 = vunpack.c.h.b16 %v241
    %v805 = vunpack.c.l.b16 %v242
    %v806 = vunpack.c.h.b16 %v242
    %v807 = vunpack.c.l.b16 %v243
    %v808 = vunpack.c.h.b16 %v243
    %v809 = vunpack.c.l.b16 %v244
    %v810 = vunpack.c.h.b16 %v244
    %v811 = vunpack.c.l.b16 %v245
    %v812 = vunpack.c.h.b16 %v245
    %v813 = vunpack.c.l.b16 %v246
    %v814 = vunpack.c.h.b16 %v246
    %v815 = vunpack.c.l.b16 %v247
    %v816 = vunpack.c.h.b16 %v247
    %v817 = vunpack.c.l.b16 %v248
    %v818 = vunpack.c.h.b16 %v248
    %v819 = vunpack.c.l.b16 %v249
    %v820 = vunpack.c.h.b16 %v249
    %v821 = vunpack.c.l.b16 %v250
    %v822 = vunpack.c.h.b16 %v250
    %v823 = vunpack.c.l.b16 %v251
    %v824 = vunpack.c.h.b16 %v251
    %v825 = vunpack.c.l.b16 %v252
    %v826 = vunpack.c.h.b16 %v252
    %v827 = vunpack.c.l.b16 %v253
    %v828 = vunpack.c.h.b16 %v253
    %v829 = vunpack.c.l.b16 %v254
    %v830 = vunpack.c.h.b16 %v254
    %v831 = vpack.c.b16 %v455, %v447
    %v832 = vpack.c.b16 %v456, %v448
    %v833 = vpack.c.b16 %v457, %v449
    %v834 = vpack.c.b16 %v458, %v450
    %v835 = vpack.c.b16 %v459, %v451
    %v836 = vpack.c.b16 %v460, %v452
    %v837 = vpack.c.b16 %v461, %v453
    %v838 = vpack.c.b16 %v462, %v454
    %v839 = vpack.c.b16 %v471, %v463
    %v840 = vpack.c.b16 %v472, %v464
    %v841 = vpack.c.b16 %v473, %v465
    %v842 = vpack.c.b16 %v474, %v466
    %v843 = vpack.c.b16 %v475, %v467
    %v844 = vpack.c.b16 %v476, %v468
    %v845 = vpack.c.b16 %v477, %v469
    %v846 = vpack.c.b16 %v478, %v470
    %v847 = vpack.c.b16 %v487, %v479
    %v848 = vpack.c.b16 %v488, %v480
    %v849 = vpack.c.b16 %v489, %v481
    %v850 = vpack.c.b16 %v490, %v482
    %v851 = vpack.c.b16 %v491, %v483
    %v852 = vpack.c.b16 %v492, %v484
    %v853 = vpack.c.b16 %v493, %v485
    %v854 = vpack.c.b16 %v494, %v486
    %v855 = vpack.c.b16 %v503, %v495
    %v856 = vpack.c.b16 %v504, %v496
    %v857 = vpack.c.b16 %v505, %v497
    %v858 = vpack.c.b16 %v506, %v498
    %v859 = vpack.c.b16 %v507, %v499
    %v860 = vpack.c.b16 %v508, %v500
    %v861 = vpack.c.b16 %v509, %v501
    %v862 = vpack.c.b16 %v510, %v502
    %v863 = vpack.c.b16 %v519, %v511
    %v864 = vpack.c.b16 %v520, %v512
    %v865 = vpack.c.b16 %v521, %v513
    %v866 = vpack.c.b16 %v522, %v514
    %v867 = vpack.c.b16 %v523, %v515
    %v868 = vpack.c.b16 %v524, %v516
    %v869 = vpack.c.b16 %v525, %v517
    %v870 = vpack.c.b16 %v526, %v518
    %v871 = vpack.c.b16 %v535, %v527
    %v872 = vpack.c.b16 %v536, %v528
    %v873 = vpack.c.b16 %v537, %v529
    %v874 = vpack.c.b16 %v538, %v530
    %v875 = vpack.c.b16 %v539, %v531
    %v876 = vpack.c.b16 %v540, %v532
    %v877 = vpack.c.b16 %v541, %v533
    %v878 = vpack.c.b16 %v542, %v534
    %v879 = vpack.c.b16 %v551, %v543
    %v880 = vpack.c.b16 %v552, %v544
    %v881 = vpack.c.b16 %v553, %v545
    %v882 = vpack.c.b16 %v554, %v546
    %v883 = vpack.c.b16 %v555, %v547
    %v884 = vpack.c.b16 %v556, %v548
    %v885 = vpack.c.b16 %v557, %v549
    %v886 = vpack.c.b16 %v558, %v550
    %v887 = vpack.c.b16 %v567, %v559
    %v888 = vpack.c.b16 %v568, %v560
    %v889 = vpack.c.b16 %v569, %v561
    %v890 = vpack.c.b16 %v570, %v562
    %v891 = vpack.c.b16 %v571, %v563
    %v892 = vpack.c.b16 %v572, %v564
    %v893 = vpack.c.b16 %v573, %v565
    %v894 = vpack.c.b16 %v574, %v566
    %v895 = vpack.c.b16 %v583, %v575
    %v896 = vpack.c.b16 %v584, %v576
    %v897 = vpack.c.b16 %v585, %v577
    %v898 = vpack.c.b16 %v586, %v578
    %v899 = vpack.c.b16 %v587, %v579
    %v900 = vpack.c.b16 %v588, %v580
    %v901 = vpack.c.b16 %v589, %v581
    %v902 = vpack.c.b16 %v590, %v582
    %v903 = vpack.c.b16 %v599, %v591
    %v904 = vpack.c.b16 %v600, %v592
    %v905 = vpack.c.b16 %v601, %v593
    %v906 = vpack.c.b16 %v602, %v594
    %v907 = vpack.c.b16 %v603, %v595
    %v908 = vpack.c.b16 %v604, %v596
    %v909 = vpack.c.b16 %v605, %v597
    %v910 = vpack.c.b16 %v606, %v598
    %v911 = vpack.c.b16 %v615, %v607
    %v912 = vpack.c.b16 %v616, %v608
    %v913 = vpack.c.b16 %v617, %v609
    %v914 = vpack.c.b16 %v618, %v610
    %v915 = vpack.c.b16 %v619, %v611
    %v916 = vpack.c.b16 %v620, %v612
    %v917 = vpack.c.b16 %v621, %v613
    %v918 = vpack.c.b16 %v622, %v614
    %v919 = vpack.c.b16 %v631, %v623
    %v920 = vpack.c.b16 %v632, %v624
    %v921 = vpack.c.b16 %v633, %v625
    %v922 = vpack.c.b16 %v634, %v626
    %v923 = vpack.c.b16 %v635, %v627
    %v924 = vpack.c.b16 %v636, %v628
    %v925 = vpack.c.b16 %v637, %v629
    %v926 = vpack.c.b16 %v638, %v630
    %v927 = vpack.c.b16 %v647, %v639
    %v928 = vpack.c.b16 %v648, %v640
    %v929 = vpack.c.b16 %v649, %v641
    %v930 = vpack.c.b16 %v650, %v642
    %v931 = vpack.c.b16 %v651, %v643
    %v932 = vpack.c.b16 %v652, %v644
    %v933 = vpack.c.b16 %v653, %v645
    %v934 = vpack.c.b16 %v654, %v646
    %v935 = vpack.c.b16 %v663, %v655
    %v936 = vpack.c.b16 %v664, %v656
    %v937 = vpack.c.b16 %v665, %v657
    %v938 = vpack.c.b16 %v666, %v658
    %v939 = vpack.c.b16 %v667, %v659
    %v940 = vpack.c.b16 %v668, %v660
    %v941 = vpack.c.b16 %v669, %v661
    %v942 = vpack.c.b16 %v670, %v662
    %v943 = vpack.c.b16 %v679, %v671
    %v944 = vpack.c.b16 %v680, %v672
    %v945 = vpack.c.b16 %v681, %v673
    %v946 = vpack.c.b16 %v682, %v674
    %v947 = vpack.c.b16 %v683, %v675
    %v948 = vpack.c.b16 %v684, %v676
    %v949 = vpack.c.b16 %v685, %v677
    %v950 = vpack.c.b16 %v686, %v678
    %v951 = vpack.c.b16 %v695, %v687
    %v952 = vpack.c.b16 %v696, %v688
    %v953 = vpack.c.b16 %v697, %v689
    %v954 = vpack.c.b16 %v698, %v690
    %v955 = vpack.c.b16 %v699, %v691
    %v956 = vpack.c.b16 %v700, %v692
    %v957 = vpack.c.b16 %v701, %v693
    %v958 = vpack.c.b16 %v702, %v694
    %v959 = vpack.c.b16 %v711, %v703
    %v960 = vpack.c.b16 %v712, %v704
    %v961 = vpack.c.b16 %v713, %v705
    %v962 = vpack.c.b16 %v714, %v706
    %v963 = vpack.c.b16 %v715, %v707
    %v964 = vpack.c.b16 %v716, %v708
    %v965 = vpack.c.b16 %v717, %v709
    %v966 = vpack.c.b16 %v718, %v710
    %v967 = vpack.c.b16 %v727, %v719
    %v968 = vpack.c.b16 %v728, %v720
    %v969 = vpack.c.b16 %v729, %v721
    %v970 = vpack.c.b16 %v730, %v722
    %v971 = vpack.c.b16 %v731, %v723
    %v972 = vpack.c.b16 %v732, %v724
    %v973 = vpack.c.b16 %v733, %v725
    %v974 = vpack.c.b16 %v734, %v726
    %v975 = vpack.c.b16 %v743, %v735
    %v976 = vpack.c.b16 %v744, %v736
    %v977 = vpack.c.b16 %v745, %v737
    %v978 = vpack.c.b16 %v746, %v738
    %v979 = vpack.c.b16 %v747, %v739
    %v980 = vpack.c.b16 %v748, %v740
    %v981 = vpack.c.b16 %v749, %v741
    %v982 = vpack.c.b16 %v750, %v742
    %v983 = vpack.c.b16 %v759, %v751
    %v984 = vpack.c.b16 %v760, %v752
    %v985 = vpack.c.b16 %v761, %v753
    %v986 = vpack.c.b16 %v762, %v754
    %v987 = vpack.c.b16 %v763, %v755
    %v988 = vpack.c.b16 %v764, %v756
    %v989 = vpack.c.b16 %v765, %v757
    %v990 = vpack.c.b16 %v766, %v758
    %v991 = vpack.c.b16 %v775, %v767
    %v992 = vpack.c.b16 %v776, %v768
    %v993 = vpack.c.b16 %v777, %v769
    %v994 = vpack.c.b16 %v778, %v770
    %v995 = vpack.c.b16 %v779, %v771
    %v996 = vpack.c.b16 %v780, %v772
    %v997 = vpack.c.b16 %v781, %v773
    %v998 = vpack.c.b16 %v782, %v774
    %v999 = vpack.c.b16 %v791, %v783
    %v1000 = vpack.c.b16 %v792, %v784
    %v1001 = vpack.c.b16 %v793, %v785
    %v1002 = vpack.c.b16 %v794, %v786
    %v1003 = vpack.c.b16 %v795, %v787
    %v1004 = vpack.c.b16 %v796, %v788
    %v1005 = vpack.c.b16 %v797, %v789
    %v1006 = vpack.c.b16 %v798, %v790
    %v1007 = vpack.c.b16 %v807, %v799
    %v1008 = vpack.c.b16 %v808, %v800
    %v1009 = vpack.c.b16 %v809, %v801
    %v1010 = vpack.c.b16 %v810, %v802
    %v1011 = vpack.c.b16 %v811, %v803
    %v1012 = vpack.c.b16 %v812, %v804
    %v1013 = vpack.c.b16 %v813, %v805
    %v1014 = vpack.c.b16 %v814, %v806
    %v1015 = vpack.c.b16 %v823, %v815
    %v1016 = vpack.c.b16 %v824, %v816
    %v1017 = vpack.c.b16 %v825, %v817
    %v1018 = vpack.c.b16 %v826, %v818
    %v1019 = vpack.c.b16 %v827, %v819
    %v1020 = vpack.c.b16 %v828, %v820
    %v1021 = vpack.c.b16 %v829, %v821
    %v1022 = vpack.c.b16 %v830, %v822
    %1215 = vmatprep.subr.bf16.mxu0 %v888
    %1216 = vmatpush1.bf16.msra.mxu0 %v887
    %1217 = vmatprep.subr.bf16.mxu0 %v880
    %1218 = vmatpush1.bf16.msra.mxu0 %v879
    %1219 = vmatprep.subr.bf16.mxu0 %v872
    %1220 = vmatpush1.bf16.msra.mxu0 %v871
    %1221 = vmatprep.subr.bf16.mxu0 %v864
    %1222 = vmatpush1.bf16.msra.mxu0 %v863
    %1223 = vmatprep.subr.bf16.mxu0 %v856
    %1224 = vmatpush1.bf16.msra.mxu0 %v855
    %1225 = vmatprep.subr.bf16.mxu0 %v848
    %1226 = vmatpush1.bf16.msra.mxu0 %v847
    %1227 = vmatprep.subr.bf16.mxu0 %v840
    %1228 = vmatpush1.bf16.msra.mxu0 %v839
    %1229 = vmatprep.subr.bf16.mxu0 %v832
    %1230 = vmatpush1.bf16.msra.mxu0 %v831
    %1231 = vmatprep.subr.bf16.mxu0 %v952
    %1232 = vmatpush2.bf16.msra.mxu0 %v951
    %1233 = vmatprep.subr.bf16.mxu0 %v944
    %1234 = vmatpush2.bf16.msra.mxu0 %v943
    %1235 = vmatprep.subr.bf16.mxu0 %v936
    %1236 = vmatpush2.bf16.msra.mxu0 %v935
    %1237 = vmatprep.subr.bf16.mxu0 %v928
    %1238 = vmatpush2.bf16.msra.mxu0 %v927
    %1239 = vmatprep.subr.bf16.mxu0 %v920
    %1240 = vmatpush2.bf16.msra.mxu0 %v919
    %1241 = vmatprep.subr.bf16.mxu0 %v912
    %1242 = vmatpush2.bf16.msra.mxu0 %v911
    %1243 = vmatprep.subr.bf16.mxu0 %v904
    %1244 = vmatpush2.bf16.msra.mxu0 %v903
    %1245 = vmatprep.subr.bf16.mxu0 %v896
    %1246 = vmatpush2.bf16.msra.mxu0 %v895
    %1247 = vmatprep.mubr.bf16.mxu0 %v61
    %1248 = vmatmul.mubr.bf16.gmra.mxu0 %v60
    %v1249 = vpop.f32.mrf.mxu0
    %v1250 = vadd.f32 0.0, %v1249
    %v1251 = vpop.f32.mrf.mxu0
    %v1252 = vadd.f32 0.0, %v1251
    %v1253 = vpop.f32.mrf.mxu0
    %v1254 = vpop.f32.mrf.mxu0
    %1255 = vdwg.mxu0
    %1256 = vmatprep.subr.bf16.mxu0 %v1016
    %1257 = vmatpush1.bf16.msra.mxu0 %v1015
    %1258 = vmatprep.subr.bf16.mxu0 %v1008
    %1259 = vmatpush1.bf16.msra.mxu0 %v1007
    %1260 = vmatprep.subr.bf16.mxu0 %v1000
    %1261 = vmatpush1.bf16.msra.mxu0 %v999
    %1262 = vmatprep.subr.bf16.mxu0 %v992
    %1263 = vmatpush1.bf16.msra.mxu0 %v991
    %1264 = vmatprep.subr.bf16.mxu0 %v984
    %1265 = vmatpush1.bf16.msra.mxu0 %v983
    %1266 = vmatprep.subr.bf16.mxu0 %v976
    %1267 = vmatpush1.bf16.msra.mxu0 %v975
    %1268 = vmatprep.subr.bf16.mxu0 %v968
    %1269 = vmatpush1.bf16.msra.mxu0 %v967
    %1270 = vmatprep.subr.bf16.mxu0 %v960
    %1271 = vmatpush1.bf16.msra.mxu0 %v959
    %1272 = vmatprep.subr.bf16.mxu0 0
    %1273 = vmatpush2.bf16.msra.mxu0 0
    %1274 = vmatprep.subr.bf16.mxu0 0
    %1275 = vmatpush2.bf16.msra.mxu0 0
    %1276 = vmatprep.subr.bf16.mxu0 0
    %1277 = vmatpush2.bf16.msra.mxu0 0
    %1278 = vmatprep.subr.bf16.mxu0 0
    %1279 = vmatpush2.bf16.msra.mxu0 0
    %1280 = vmatprep.subr.bf16.mxu0 0
    %1281 = vmatpush2.bf16.msra.mxu0 0
    %1282 = vmatprep.subr.bf16.mxu0 0
    %1283 = vmatpush2.bf16.msra.mxu0 0
    %1284 = vmatprep.subr.bf16.mxu0 0
    %1285 = vmatpush2.bf16.msra.mxu0 0
    %1286 = vmatprep.subr.bf16.mxu0 0
    %1287 = vmatpush2.bf16.msra.mxu0 0
    %1288 = vmatprep.mubr.bf16.mxu0 0
    %1289 = vmatmul.mubr.bf16.gmra.mxu0 %v62
    %v1290 = vpop.f32.mrf.mxu0
    %v1291 = vadd.f32 %v1250, %v1290
    %v1292 = vpop.f32.mrf.mxu0
    %v1293 = vadd.f32 %v1252, %v1292
    %v1294 = vpop.f32.mrf.mxu0
    %v1295 = vpop.f32.mrf.mxu0
    %1296 = vdwg.mxu0
    %1297 = vmatprep.subr.bf16.mxu0 %v890
    %1298 = vmatpush1.bf16.msra.mxu0 %v889
    %1299 = vmatprep.subr.bf16.mxu0 %v882
    %1300 = vmatpush1.bf16.msra.mxu0 %v881
    %1301 = vmatprep.subr.bf16.mxu0 %v874
    %1302 = vmatpush1.bf16.msra.mxu0 %v873
    %1303 = vmatprep.subr.bf16.mxu0 %v866
    %1304 = vmatpush1.bf16.msra.mxu0 %v865
    %1305 = vmatprep.subr.bf16.mxu0 %v858
    %1306 = vmatpush1.bf16.msra.mxu0 %v857
    %1307 = vmatprep.subr.bf16.mxu0 %v850
    %1308 = vmatpush1.bf16.msra.mxu0 %v849
    %1309 = vmatprep.subr.bf16.mxu0 %v842
    %1310 = vmatpush1.bf16.msra.mxu0 %v841
    %1311 = vmatprep.subr.bf16.mxu0 %v834
    %1312 = vmatpush1.bf16.msra.mxu0 %v833
    %1313 = vmatprep.subr.bf16.mxu0 %v954
    %1314 = vmatpush2.bf16.msra.mxu0 %v953
    %1315 = vmatprep.subr.bf16.mxu0 %v946
    %1316 = vmatpush2.bf16.msra.mxu0 %v945
    %1317 = vmatprep.subr.bf16.mxu0 %v938
    %1318 = vmatpush2.bf16.msra.mxu0 %v937
    %1319 = vmatprep.subr.bf16.mxu0 %v930
    %1320 = vmatpush2.bf16.msra.mxu0 %v929
    %1321 = vmatprep.subr.bf16.mxu0 %v922
    %1322 = vmatpush2.bf16.msra.mxu0 %v921
    %1323 = vmatprep.subr.bf16.mxu0 %v914
    %1324 = vmatpush2.bf16.msra.mxu0 %v913
    %1325 = vmatprep.subr.bf16.mxu0 %v906
    %1326 = vmatpush2.bf16.msra.mxu0 %v905
    %1327 = vmatprep.subr.bf16.mxu0 %v898
    %1328 = vmatpush2.bf16.msra.mxu0 %v897
    %1329 = vmatprep.mubr.bf16.mxu0 %v61
    %1330 = vmatmul.mubr.bf16.gmra.mxu0 %v60
    %v1331 = vpop.f32.mrf.mxu0
    %v1332 = vadd.f32 0.0, %v1331
    %v1333 = vpop.f32.mrf.mxu0
    %v1334 = vadd.f32 0.0, %v1333
    %v1335 = vpop.f32.mrf.mxu0
    %v1336 = vpop.f32.mrf.mxu0
    %1337 = vdwg.mxu0
    %1338 = vmatprep.subr.bf16.mxu0 %v1018
    %1339 = vmatpush1.bf16.msra.mxu0 %v1017
    %1340 = vmatprep.subr.bf16.mxu0 %v1010
    %1341 = vmatpush1.bf16.msra.mxu0 %v1009
    %1342 = vmatprep.subr.bf16.mxu0 %v1002
    %1343 = vmatpush1.bf16.msra.mxu0 %v1001
    %1344 = vmatprep.subr.bf16.mxu0 %v994
    %1345 = vmatpush1.bf16.msra.mxu0 %v993
    %1346 = vmatprep.subr.bf16.mxu0 %v986
    %1347 = vmatpush1.bf16.msra.mxu0 %v985
    %1348 = vmatprep.subr.bf16.mxu0 %v978
    %1349 = vmatpush1.bf16.msra.mxu0 %v977
    %1350 = vmatprep.subr.bf16.mxu0 %v970
    %1351 = vmatpush1.bf16.msra.mxu0 %v969
    %1352 = vmatprep.subr.bf16.mxu0 %v962
    %1353 = vmatpush1.bf16.msra.mxu0 %v961
    %1354 = vmatprep.subr.bf16.mxu0 0
    %1355 = vmatpush2.bf16.msra.mxu0 0
    %1356 = vmatprep.subr.bf16.mxu0 0
    %1357 = vmatpush2.bf16.msra.mxu0 0
    %1358 = vmatprep.subr.bf16.mxu0 0
    %1359 = vmatpush2.bf16.msra.mxu0 0
    %1360 = vmatprep.subr.bf16.mxu0 0
    %1361 = vmatpush2.bf16.msra.mxu0 0
    %1362 = vmatprep.subr.bf16.mxu0 0
    %1363 = vmatpush2.bf16.msra.mxu0 0
    %1364 = vmatprep.subr.bf16.mxu0 0
    %1365 = vmatpush2.bf16.msra.mxu0 0
    %1366 = vmatprep.subr.bf16.mxu0 0
    %1367 = vmatpush2.bf16.msra.mxu0 0
    %1368 = vmatprep.subr.bf16.mxu0 0
    %1369 = vmatpush2.bf16.msra.mxu0 0
    %1370 = vmatprep.mubr.bf16.mxu0 0
    %1371 = vmatmul.mubr.bf16.gmra.mxu0 %v62
    %v1372 = vpop.f32.mrf.mxu0
    %v1373 = vadd.f32 %v1332, %v1372
    %v1374 = vpop.f32.mrf.mxu0
    %v1375 = vadd.f32 %v1334, %v1374
    %v1376 = vpop.f32.mrf.mxu0
    %v1377 = vpop.f32.mrf.mxu0
    %1378 = vdwg.mxu0
    %1379 = vmatprep.subr.bf16.mxu0 %v892
    %1380 = vmatpush1.bf16.msra.mxu0 %v891
    %1381 = vmatprep.subr.bf16.mxu0 %v884
    %1382 = vmatpush1.bf16.msra.mxu0 %v883
    %1383 = vmatprep.subr.bf16.mxu0 %v876
    %1384 = vmatpush1.bf16.msra.mxu0 %v875
    %1385 = vmatprep.subr.bf16.mxu0 %v868
    %1386 = vmatpush1.bf16.msra.mxu0 %v867
    %1387 = vmatprep.subr.bf16.mxu0 %v860
    %1388 = vmatpush1.bf16.msra.mxu0 %v859
    %1389 = vmatprep.subr.bf16.mxu0 %v852
    %1390 = vmatpush1.bf16.msra.mxu0 %v851
    %1391 = vmatprep.subr.bf16.mxu0 %v844
    %1392 = vmatpush1.bf16.msra.mxu0 %v843
    %1393 = vmatprep.subr.bf16.mxu0 %v836
    %1394 = vmatpush1.bf16.msra.mxu0 %v835
    %1395 = vmatprep.subr.bf16.mxu0 %v956
    %1396 = vmatpush2.bf16.msra.mxu0 %v955
    %1397 = vmatprep.subr.bf16.mxu0 %v948
    %1398 = vmatpush2.bf16.msra.mxu0 %v947
    %1399 = vmatprep.subr.bf16.mxu0 %v940
    %1400 = vmatpush2.bf16.msra.mxu0 %v939
    %1401 = vmatprep.subr.bf16.mxu0 %v932
    %1402 = vmatpush2.bf16.msra.mxu0 %v931
    %1403 = vmatprep.subr.bf16.mxu0 %v924
    %1404 = vmatpush2.bf16.msra.mxu0 %v923
    %1405 = vmatprep.subr.bf16.mxu0 %v916
    %1406 = vmatpush2.bf16.msra.mxu0 %v915
    %1407 = vmatprep.subr.bf16.mxu0 %v908
    %1408 = vmatpush2.bf16.msra.mxu0 %v907
    %1409 = vmatprep.subr.bf16.mxu0 %v900
    %1410 = vmatpush2.bf16.msra.mxu0 %v899
    %1411 = vmatprep.mubr.bf16.mxu0 %v61
    %1412 = vmatmul.mubr.bf16.gmra.mxu0 %v60
    %v1413 = vpop.f32.mrf.mxu0
    %v1414 = vadd.f32 0.0, %v1413
    %v1415 = vpop.f32.mrf.mxu0
    %v1416 = vadd.f32 0.0, %v1415
    %v1417 = vpop.f32.mrf.mxu0
    %v1418 = vpop.f32.mrf.mxu0
    %1419 = vdwg.mxu0
    %1420 = vmatprep.subr.bf16.mxu0 %v1020
    %1421 = vmatpush1.bf16.msra.mxu0 %v1019
    %1422 = vmatprep.subr.bf16.mxu0 %v1012
    %1423 = vmatpush1.bf16.msra.mxu0 %v1011
    %1424 = vmatprep.subr.bf16.mxu0 %v1004
    %1425 = vmatpush1.bf16.msra.mxu0 %v1003
    %1426 = vmatprep.subr.bf16.mxu0 %v996
    %1427 = vmatpush1.bf16.msra.mxu0 %v995
    %1428 = vmatprep.subr.bf16.mxu0 %v988
    %1429 = vmatpush1.bf16.msra.mxu0 %v987
    %1430 = vmatprep.subr.bf16.mxu0 %v980
    %1431 = vmatpush1.bf16.msra.mxu0 %v979
    %1432 = vmatprep.subr.bf16.mxu0 %v972
    %1433 = vmatpush1.bf16.msra.mxu0 %v971
    %1434 = vmatprep.subr.bf16.mxu0 %v964
    %1435 = vmatpush1.bf16.msra.mxu0 %v963
    %1436 = vmatprep.subr.bf16.mxu0 0
    %1437 = vmatpush2.bf16.msra.mxu0 0
    %1438 = vmatprep.subr.bf16.mxu0 0
    %1439 = vmatpush2.bf16.msra.mxu0 0
    %1440 = vmatprep.subr.bf16.mxu0 0
    %1441 = vmatpush2.bf16.msra.mxu0 0
    %1442 = vmatprep.subr.bf16.mxu0 0
    %1443 = vmatpush2.bf16.msra.mxu0 0
    %1444 = vmatprep.subr.bf16.mxu0 0
    %1445 = vmatpush2.bf16.msra.mxu0 0
    %1446 = vmatprep.subr.bf16.mxu0 0
    %1447 = vmatpush2.bf16.msra.mxu0 0
    %1448 = vmatprep.subr.bf16.mxu0 0
    %1449 = vmatpush2.bf16.msra.mxu0 0
    %1450 = vmatprep.subr.bf16.mxu0 0
    %1451 = vmatpush2.bf16.msra.mxu0 0
    %1452 = vmatprep.mubr.bf16.mxu0 0
    %1453 = vmatmul.mubr.bf16.gmra.mxu0 %v62
    %v1454 = vpop.f32.mrf.mxu0
    %v1455 = vadd.f32 %v1414, %v1454
    %v1456 = vpop.f32.mrf.mxu0
    %v1457 = vadd.f32 %v1416, %v1456
    %v1458 = vpop.f32.mrf.mxu0
    %v1459 = vpop.f32.mrf.mxu0
    %1460 = vdwg.mxu0
    %1461 = vmatprep.subr.bf16.mxu0 %v894
    %1462 = vmatpush1.bf16.msra.mxu0 %v893
    %1463 = vmatprep.subr.bf16.mxu0 %v886
    %1464 = vmatpush1.bf16.msra.mxu0 %v885
    %1465 = vmatprep.subr.bf16.mxu0 %v878
    %1466 = vmatpush1.bf16.msra.mxu0 %v877
    %1467 = vmatprep.subr.bf16.mxu0 %v870
    %1468 = vmatpush1.bf16.msra.mxu0 %v869
    %1469 = vmatprep.subr.bf16.mxu0 %v862
    %1470 = vmatpush1.bf16.msra.mxu0 %v861
    %1471 = vmatprep.subr.bf16.mxu0 %v854
    %1472 = vmatpush1.bf16.msra.mxu0 %v853
    %1473 = vmatprep.subr.bf16.mxu0 %v846
    %1474 = vmatpush1.bf16.msra.mxu0 %v845
    %1475 = vmatprep.subr.bf16.mxu0 %v838
    %1476 = vmatpush1.bf16.msra.mxu0 %v837
    %1477 = vmatprep.subr.bf16.mxu0 %v958
    %1478 = vmatpush2.bf16.msra.mxu0 %v957
    %1479 = vmatprep.subr.bf16.mxu0 %v950
    %1480 = vmatpush2.bf16.msra.mxu0 %v949
    %1481 = vmatprep.subr.bf16.mxu0 %v942
    %1482 = vmatpush2.bf16.msra.mxu0 %v941
    %1483 = vmatprep.subr.bf16.mxu0 %v934
    %1484 = vmatpush2.bf16.msra.mxu0 %v933
    %1485 = vmatprep.subr.bf16.mxu0 %v926
    %1486 = vmatpush2.bf16.msra.mxu0 %v925
    %1487 = vmatprep.subr.bf16.mxu0 %v918
    %1488 = vmatpush2.bf16.msra.mxu0 %v917
    %1489 = vmatprep.subr.bf16.mxu0 %v910
    %1490 = vmatpush2.bf16.msra.mxu0 %v909
    %1491 = vmatprep.subr.bf16.mxu0 %v902
    %1492 = vmatpush2.bf16.msra.mxu0 %v901
    %1493 = vmatprep.mubr.bf16.mxu0 %v61
    %1494 = vmatmul.mubr.bf16.gmra.mxu0 %v60
    %v1495 = vpop.f32.mrf.mxu0
    %v1496 = vadd.f32 0.0, %v1495
    %v1497 = vpop.f32.mrf.mxu0
    %v1498 = vadd.f32 0.0, %v1497
    %v1499 = vpop.f32.mrf.mxu0
    %v1500 = vpop.f32.mrf.mxu0
    %1501 = vdwg.mxu0
    %1502 = vmatprep.subr.bf16.mxu0 %v1022
    %1503 = vmatpush1.bf16.msra.mxu0 %v1021
    %1504 = vmatprep.subr.bf16.mxu0 %v1014
    %1505 = vmatpush1.bf16.msra.mxu0 %v1013
    %1506 = vmatprep.subr.bf16.mxu0 %v1006
    %1507 = vmatpush1.bf16.msra.mxu0 %v1005
    %1508 = vmatprep.subr.bf16.mxu0 %v998
    %1509 = vmatpush1.bf16.msra.mxu0 %v997
    %1510 = vmatprep.subr.bf16.mxu0 %v990
    %1511 = vmatpush1.bf16.msra.mxu0 %v989
    %1512 = vmatprep.subr.bf16.mxu0 %v982
    %1513 = vmatpush1.bf16.msra.mxu0 %v981
    %1514 = vmatprep.subr.bf16.mxu0 %v974
    %1515 = vmatpush1.bf16.msra.mxu0 %v973
    %1516 = vmatprep.subr.bf16.mxu0 %v966
    %1517 = vmatpush1.bf16.msra.mxu0 %v965
    %1518 = vmatprep.subr.bf16.mxu0 0
    %1519 = vmatpush2.bf16.msra.mxu0 0
    %1520 = vmatprep.subr.bf16.mxu0 0
    %1521 = vmatpush2.bf16.msra.mxu0 0
    %1522 = vmatprep.subr.bf16.mxu0 0
    %1523 = vmatpush2.bf16.msra.mxu0 0
    %1524 = vmatprep.subr.bf16.mxu0 0
    %1525 = vmatpush2.bf16.msra.mxu0 0
    %1526 = vmatprep.subr.bf16.mxu0 0
    %1527 = vmatpush2.bf16.msra.mxu0 0
    %1528 = vmatprep.subr.bf16.mxu0 0
    %1529 = vmatpush2.bf16.msra.mxu0 0
    %1530 = vmatprep.subr.bf16.mxu0 0
    %1531 = vmatpush2.bf16.msra.mxu0 0
    %1532 = vmatprep.subr.bf16.mxu0 0
    %1533 = vmatpush2.bf16.msra.mxu0 0
    %1534 = vmatprep.mubr.bf16.mxu0 0
    %1535 = vmatmul.mubr.bf16.gmra.mxu0 %v62
    %v1536 = vpop.f32.mrf.mxu0
    %v1537 = vadd.f32 %v1496, %v1536
    %v1538 = vpop.f32.mrf.mxu0
    %v1539 = vadd.f32 %v1498, %v1538
    %v1540 = vpop.f32.mrf.mxu0
    %v1541 = vpop.f32.mrf.mxu0
    %1542 = vdwg.mxu0
    %v1543 = vmax.f32 %v1291, %v1373
    %v1544 = vmax.f32 %v1293, %v1375
    %v1545 = vmax.f32 %v1455, %v1537
    %v1546 = vmax.f32 %v1457, %v1539
    %v1547 = vmax.f32 %v1543, %v1545
    %v1548 = vmax.f32 %v1544, %v1546
    %v1549 = vld [vmem:[%s2] sm:$0x3]
    %v1551 = vlaneseq
    %v1552 = vshrl.u32 %v1551, 7
    %v1553 = vsub.s32 0, %v1552
    %v1554 = vrot.slane %v1549, %v1553
    %v1555 = vlaneseq
    %v1556 = vshrl.u32 %v1555, 7
    %v1557 = vsub.s32 1, %v1556
    %v1558 = vrot.slane %v1549, %v1557
    %v1561 = vadd.f32 %v1547, %v1554
    %v1562 = vadd.f32 %v1548, %v1558
    %v1563 = vmax.f32 %v1561, 0.0
    %v1564 = vmax.f32 %v1562, 0.0
    %v1565 = vpack.c.bf16 %v1563, %v1563
    %v1566 = vpack.c.bf16 %v1564, %v1564
    %v1567 = vld [vmem:[%s3] sm:$0xf]
    %v1568 = vld [vmem:[%s3 + $0x4] sm:$0xf]
    %v1569 = vld [vmem:[%s3 + $0x8] sm:$0xf]
    %v1570 = vld [vmem:[%s3 + $0xc] sm:$0xf]
    %v1571 = vld [vmem:[%s3 + $0x10] sm:$0xf]
    %v1572 = vld [vmem:[%s3 + $0x14] sm:$0xf]
    %v1573 = vld [vmem:[%s3 + $0x18] sm:$0xf]
    %v1574 = vld [vmem:[%s3 + $0x1c] sm:$0xf]
    %v1575 = vld [vmem:[%s3 + $0x20] sm:$0xf]
    %v1576 = vld [vmem:[%s3 + $0x24] sm:$0xf]
    %v1577 = vld [vmem:[%s3 + $0x28] sm:$0xf]
    %v1578 = vld [vmem:[%s3 + $0x2c] sm:$0xf]
    %v1579 = vld [vmem:[%s3 + $0x30] sm:$0xf]
    %v1580 = vld [vmem:[%s3 + $0x34] sm:$0xf]
    %v1581 = vld [vmem:[%s3 + $0x38] sm:$0xf]
    %v1582 = vld [vmem:[%s3 + $0x3c] sm:$0xf]
    %v1583 = vld [vmem:[%s3 + $0x40] sm:$0xf]
    %v1584 = vld [vmem:[%s3 + $0x44] sm:$0xf]
    %v1585 = vld [vmem:[%s3 + $0x48] sm:$0xf]
    %v1586 = vld [vmem:[%s3 + $0x4c] sm:$0xf]
    %v1587 = vld [vmem:[%s3 + $0x50] sm:$0xf]
    %v1588 = vld [vmem:[%s3 + $0x54] sm:$0xf]
    %v1589 = vld [vmem:[%s3 + $0x58] sm:$0xf]
    %v1590 = vld [vmem:[%s3 + $0x5c] sm:$0xf]
    %v1591 = vld [vmem:[%s3 + $0x60] sm:$0xf]
    %v1592 = vld [vmem:[%s3 + $0x64] sm:$0xf]
    %v1593 = vld [vmem:[%s3 + $0x68] sm:$0xf]
    %v1594 = vld [vmem:[%s3 + $0x6c] sm:$0xf]
    %v1595 = vld [vmem:[%s3 + $0x70] sm:$0xf]
    %v1596 = vld [vmem:[%s3 + $0x74] sm:$0xf]
    %v1597 = vld [vmem:[%s3 + $0x78] sm:$0xf]
    %v1598 = vld [vmem:[%s3 + $0x7c] sm:$0xf]
    %v1599 = vld [vmem:[%s4] sm:$0x1]
    %v1601 = vlaneseq
    %v1602 = vshrl.u32 %v1601, 7
    %v1603 = vsub.s32 0, %v1602
    %v1604 = vrot.slane %v1599, %v1603
    %v1638 = vunpack.c.l.b16 %v1567
    %v1639 = vunpack.c.l.b16 %v1568
    %v1640 = vunpack.c.l.b16 %v1569
    %v1641 = vunpack.c.l.b16 %v1570
    %v1642 = vunpack.c.l.b16 %v1571
    %v1643 = vunpack.c.l.b16 %v1572
    %v1644 = vunpack.c.l.b16 %v1573
    %v1645 = vunpack.c.l.b16 %v1574
    %v1646 = vunpack.c.l.b16 %v1575
    %v1647 = vunpack.c.l.b16 %v1576
    %v1648 = vunpack.c.l.b16 %v1577
    %v1649 = vunpack.c.l.b16 %v1578
    %v1650 = vunpack.c.l.b16 %v1579
    %v1651 = vunpack.c.l.b16 %v1580
    %v1652 = vunpack.c.l.b16 %v1581
    %v1653 = vunpack.c.l.b16 %v1582
    %v1654 = vunpack.c.l.b16 %v1583
    %v1655 = vunpack.c.l.b16 %v1584
    %v1656 = vunpack.c.l.b16 %v1585
    %v1657 = vunpack.c.l.b16 %v1586
    %v1658 = vunpack.c.l.b16 %v1587
    %v1659 = vunpack.c.l.b16 %v1588
    %v1660 = vunpack.c.l.b16 %v1589
    %v1661 = vunpack.c.l.b16 %v1590
    %v1662 = vunpack.c.l.b16 %v1591
    %v1663 = vunpack.c.l.b16 %v1592
    %v1664 = vunpack.c.l.b16 %v1593
    %v1665 = vunpack.c.l.b16 %v1594
    %v1666 = vunpack.c.l.b16 %v1595
    %v1667 = vunpack.c.l.b16 %v1596
    %v1668 = vunpack.c.l.b16 %v1597
    %v1669 = vunpack.c.l.b16 %v1598
    %v1670 = vpack.c.b16 %v1639, %v1638
    %v1671 = vpack.c.b16 %v1641, %v1640
    %v1672 = vpack.c.b16 %v1643, %v1642
    %v1673 = vpack.c.b16 %v1645, %v1644
    %v1674 = vpack.c.b16 %v1647, %v1646
    %v1675 = vpack.c.b16 %v1649, %v1648
    %v1676 = vpack.c.b16 %v1651, %v1650
    %v1677 = vpack.c.b16 %v1653, %v1652
    %v1678 = vpack.c.b16 %v1655, %v1654
    %v1679 = vpack.c.b16 %v1657, %v1656
    %v1680 = vpack.c.b16 %v1659, %v1658
    %v1681 = vpack.c.b16 %v1661, %v1660
    %v1682 = vpack.c.b16 %v1663, %v1662
    %v1683 = vpack.c.b16 %v1665, %v1664
    %v1684 = vpack.c.b16 %v1667, %v1666
    %v1685 = vpack.c.b16 %v1669, %v1668
    %1702 = vmatprep.subr.bf16.mxu0 0
    %1703 = vmatpush1.bf16.msra.mxu0 %v1677
    %1704 = vmatprep.subr.bf16.mxu0 0
    %1705 = vmatpush1.bf16.msra.mxu0 %v1676
    %1706 = vmatprep.subr.bf16.mxu0 0
    %1707 = vmatpush1.bf16.msra.mxu0 %v1675
    %1708 = vmatprep.subr.bf16.mxu0 0
    %1709 = vmatpush1.bf16.msra.mxu0 %v1674
    %1710 = vmatprep.subr.bf16.mxu0 0
    %1711 = vmatpush1.bf16.msra.mxu0 %v1673
    %1712 = vmatprep.subr.bf16.mxu0 0
    %1713 = vmatpush1.bf16.msra.mxu0 %v1672
    %1714 = vmatprep.subr.bf16.mxu0 0
    %1715 = vmatpush1.bf16.msra.mxu0 %v1671
    %1716 = vmatprep.subr.bf16.mxu0 0
    %1717 = vmatpush1.bf16.msra.mxu0 %v1670
    %1718 = vmatprep.subr.bf16.mxu0 0
    %1719 = vmatpush2.bf16.msra.mxu0 %v1685
    %1720 = vmatprep.subr.bf16.mxu0 0
    %1721 = vmatpush2.bf16.msra.mxu0 %v1684
    %1722 = vmatprep.subr.bf16.mxu0 0
    %1723 = vmatpush2.bf16.msra.mxu0 %v1683
    %1724 = vmatprep.subr.bf16.mxu0 0
    %1725 = vmatpush2.bf16.msra.mxu0 %v1682
    %1726 = vmatprep.subr.bf16.mxu0 0
    %1727 = vmatpush2.bf16.msra.mxu0 %v1681
    %1728 = vmatprep.subr.bf16.mxu0 0
    %1729 = vmatpush2.bf16.msra.mxu0 %v1680
    %1730 = vmatprep.subr.bf16.mxu0 0
    %1731 = vmatpush2.bf16.msra.mxu0 %v1679
    %1732 = vmatprep.subr.bf16.mxu0 0
    %1733 = vmatpush2.bf16.msra.mxu0 %v1678
    %1734 = vmatprep.mubr.bf16.mxu0 %v1566
    %1735 = vmatmul.mubr.bf16.gmra.mxu0 %v1565
    %v1736 = vpop.f32.mrf.mxu0
    %v1737 = vadd.f32 %v1604, %v1736
    %v1738 = vpop.f32.mrf.mxu0
    %v1739 = vpop.f32.mrf.mxu0
    %v1740 = vpop.f32.mrf.mxu0
    %1741 = vdwg.mxu0
    %v1742 = vmax.f32 %v1737, 0.0
    %1743 = vst [vmem:[%s8] sm:$0xff] %v1742
    %v1744 = vpack.c.bf16 %v1742, %v1742
    %v1745 = vld [vmem:[#allocation4] sm:$0xff]
    %v1746 = vld [vmem:[#allocation4 + $0x8] sm:$0xf]
    %v1747 = vld [vmem:[#allocation4 + $0xc] sm:$0xff]
    %v1748 = vld [vmem:[#allocation4 + $0x14] sm:$0xf]
    %v1749 = vld [vmem:[#allocation4 + $0x18] sm:$0xff]
    %v1750 = vld [vmem:[#allocation4 + $0x20] sm:$0xf]
    %v1751 = vld [vmem:[#allocation4 + $0x24] sm:$0xff]
    %v1752 = vld [vmem:[#allocation4 + $0x2c] sm:$0xf]
    %v1753 = vld [vmem:[#allocation4 + $0x30] sm:$0xff]
    %v1754 = vld [vmem:[#allocation4 + $0x38] sm:$0xf]
    %v1755 = vld [vmem:[#allocation4 + $0x3c] sm:$0xff]
    %v1756 = vld [vmem:[#allocation4 + $0x44] sm:$0xf]
    %v1757 = vld [vmem:[#allocation4 + $0x48] sm:$0xff]
    %v1758 = vld [vmem:[#allocation4 + $0x50] sm:$0xf]
    %v1759 = vld [vmem:[#allocation4 + $0x54] sm:$0xff]
    %v1760 = vld [vmem:[#allocation4 + $0x5c] sm:$0xf]
    %v1761 = vld [vmem:[#allocation4 + $0x60] sm:$0xff]
    %v1762 = vld [vmem:[#allocation4 + $0x68] sm:$0xf]
    %v1763 = vld [vmem:[#allocation4 + $0x6c] sm:$0xff]
    %v1764 = vld [vmem:[#allocation4 + $0x74] sm:$0xf]
    %v1765 = vld [vmem:[#allocation4 + $0x78] sm:$0xff]
    %v1766 = vld [vmem:[#allocation4 + $0x80] sm:$0xf]
    %v1767 = vld [vmem:[#allocation4 + $0x84] sm:$0xff]
    %v1768 = vld [vmem:[#allocation4 + $0x8c] sm:$0xf]
    %v1769 = vld [vmem:[#allocation4 + $0x90] sm:$0xff]
    %v1770 = vld [vmem:[#allocation4 + $0x98] sm:$0xf]
    %v1771 = vld [vmem:[#allocation4 + $0x9c] sm:$0xff]
    %v1772 = vld [vmem:[#allocation4 + $0xa4] sm:$0xf]
    %v1773 = vld [vmem:[#allocation4 + $0xa8] sm:$0xff]
    %v1774 = vld [vmem:[#allocation4 + $0xb0] sm:$0xf]
    %v1775 = vld [vmem:[#allocation4 + $0xb4] sm:$0xff]
    %v1776 = vld [vmem:[#allocation4 + $0xbc] sm:$0xf]
    %v1777 = vld [vmem:[%s6] sm:$0x7]
    %v1779 = vlaneseq
    %v1780 = vshrl.u32 %v1779, 7
    %v1781 = vsub.s32 0, %v1780
    %v1782 = vrot.slane %v1777, %v1781
    %v1783 = vlaneseq
    %v1784 = vshrl.u32 %v1783, 7
    %v1785 = vsub.s32 1, %v1784
    %v1786 = vrot.slane %v1777, %v1785
    %v1787 = vlaneseq
    %v1788 = vshrl.u32 %v1787, 7
    %v1789 = vsub.s32 2, %v1788
    %v1790 = vrot.slane %v1777, %v1789
    %v1826 = vunpack.c.l.b16 %v1745
    %v1827 = vunpack.c.h.b16 %v1745
    %v1828 = vunpack.c.l.b16 %v1746
    %v1829 = vunpack.c.l.b16 %v1747
    %v1830 = vunpack.c.h.b16 %v1747
    %v1831 = vunpack.c.l.b16 %v1748
    %v1832 = vunpack.c.l.b16 %v1749
    %v1833 = vunpack.c.h.b16 %v1749
    %v1834 = vunpack.c.l.b16 %v1750
    %v1835 = vunpack.c.l.b16 %v1751
    %v1836 = vunpack.c.h.b16 %v1751
    %v1837 = vunpack.c.l.b16 %v1752
    %v1838 = vunpack.c.l.b16 %v1753
    %v1839 = vunpack.c.h.b16 %v1753
    %v1840 = vunpack.c.l.b16 %v1754
    %v1841 = vunpack.c.l.b16 %v1755
    %v1842 = vunpack.c.h.b16 %v1755
    %v1843 = vunpack.c.l.b16 %v1756
    %v1844 = vunpack.c.l.b16 %v1757
    %v1845 = vunpack.c.h.b16 %v1757
    %v1846 = vunpack.c.l.b16 %v1758
    %v1847 = vunpack.c.l.b16 %v1759
    %v1848 = vunpack.c.h.b16 %v1759
    %v1849 = vunpack.c.l.b16 %v1760
    %v1850 = vunpack.c.l.b16 %v1761
    %v1851 = vunpack.c.h.b16 %v1761
    %v1852 = vunpack.c.l.b16 %v1762
    %v1853 = vunpack.c.l.b16 %v1763
    %v1854 = vunpack.c.h.b16 %v1763
    %v1855 = vunpack.c.l.b16 %v1764
    %v1856 = vunpack.c.l.b16 %v1765
    %v1857 = vunpack.c.h.b16 %v1765
    %v1858 = vunpack.c.l.b16 %v1766
    %v1859 = vunpack.c.l.b16 %v1767
    %v1860 = vunpack.c.h.b16 %v1767
    %v1861 = vunpack.c.l.b16 %v1768
    %v1862 = vunpack.c.l.b16 %v1769
    %v1863 = vunpack.c.h.b16 %v1769
    %v1864 = vunpack.c.l.b16 %v1770
    %v1865 = vunpack.c.l.b16 %v1771
    %v1866 = vunpack.c.h.b16 %v1771
    %v1867 = vunpack.c.l.b16 %v1772
    %v1868 = vunpack.c.l.b16 %v1773
    %v1869 = vunpack.c.h.b16 %v1773
    %v1870 = vunpack.c.l.b16 %v1774
    %v1871 = vunpack.c.l.b16 %v1775
    %v1872 = vunpack.c.h.b16 %v1775
    %v1873 = vunpack.c.l.b16 %v1776
    %v1874 = vpack.c.b16 %v1829, %v1826
    %v1875 = vpack.c.b16 %v1830, %v1827
    %v1876 = vpack.c.b16 %v1831, %v1828
    %v1877 = vpack.c.b16 %v1835, %v1832
    %v1878 = vpack.c.b16 %v1836, %v1833
    %v1879 = vpack.c.b16 %v1837, %v1834
    %v1880 = vpack.c.b16 %v1841, %v1838
    %v1881 = vpack.c.b16 %v1842, %v1839
    %v1882 = vpack.c.b16 %v1843, %v1840
    %v1883 = vpack.c.b16 %v1847, %v1844
    %v1884 = vpack.c.b16 %v1848, %v1845
    %v1885 = vpack.c.b16 %v1849, %v1846
    %v1886 = vpack.c.b16 %v1853, %v1850
    %v1887 = vpack.c.b16 %v1854, %v1851
    %v1888 = vpack.c.b16 %v1855, %v1852
    %v1889 = vpack.c.b16 %v1859, %v1856
    %v1890 = vpack.c.b16 %v1860, %v1857
    %v1891 = vpack.c.b16 %v1861, %v1858
    %v1892 = vpack.c.b16 %v1865, %v1862
    %v1893 = vpack.c.b16 %v1866, %v1863
    %v1894 = vpack.c.b16 %v1867, %v1864
    %v1895 = vpack.c.b16 %v1871, %v1868
    %v1896 = vpack.c.b16 %v1872, %v1869
    %v1897 = vpack.c.b16 %v1873, %v1870
    %1922 = vmatprep.subr.bf16.mxu0 %v1896
    %1923 = vmatpush1.bf16.msra.mxu0 %v1895
    %1924 = vmatprep.subr.bf16.mxu0 %v1893
    %1925 = vmatpush1.bf16.msra.mxu0 %v1892
    %1926 = vmatprep.subr.bf16.mxu0 %v1890
    %1927 = vmatpush1.bf16.msra.mxu0 %v1889
    %1928 = vmatprep.subr.bf16.mxu0 %v1887
    %1929 = vmatpush1.bf16.msra.mxu0 %v1886
    %1930 = vmatprep.subr.bf16.mxu0 %v1884
    %1931 = vmatpush1.bf16.msra.mxu0 %v1883
    %1932 = vmatprep.subr.bf16.mxu0 %v1881
    %1933 = vmatpush1.bf16.msra.mxu0 %v1880
    %1934 = vmatprep.subr.bf16.mxu0 %v1878
    %1935 = vmatpush1.bf16.msra.mxu0 %v1877
    %1936 = vmatprep.subr.bf16.mxu0 %v1875
    %1937 = vmatpush1.bf16.msra.mxu0 %v1874
    %1938 = vmatprep.subr.bf16.mxu0 0
    %1939 = vmatpush2.bf16.msra.mxu0 0
    %1940 = vmatprep.subr.bf16.mxu0 0
    %1941 = vmatpush2.bf16.msra.mxu0 0
    %1942 = vmatprep.subr.bf16.mxu0 0
    %1943 = vmatpush2.bf16.msra.mxu0 0
    %1944 = vmatprep.subr.bf16.mxu0 0
    %1945 = vmatpush2.bf16.msra.mxu0 0
    %1946 = vmatprep.subr.bf16.mxu0 0
    %1947 = vmatpush2.bf16.msra.mxu0 0
    %1948 = vmatprep.subr.bf16.mxu0 0
    %1949 = vmatpush2.bf16.msra.mxu0 0
    %1950 = vmatprep.subr.bf16.mxu0 0
    %1951 = vmatpush2.bf16.msra.mxu0 0
    %1952 = vmatprep.subr.bf16.mxu0 0
    %1953 = vmatpush2.bf16.msra.mxu0 0
    %1954 = vmatprep.mubr.bf16.mxu0 0
    %1955 = vmatmul.mubr.bf16.gmra.mxu0 %v1744
    %v1956 = vpop.f32.mrf.mxu0
    %v1957 = vadd.f32 %v1782, %v1956
    %v1958 = vpop.f32.mrf.mxu0
    %v1959 = vadd.f32 %v1786, %v1958
    %v1960 = vpop.f32.mrf.mxu0
    %v1961 = vpop.f32.mrf.mxu0
    %1962 = vdwg.mxu0
    %1963 = vmatprep.subr.bf16.mxu0 0
    %1964 = vmatpush1.bf16.msra.mxu0 %v1897
    %1965 = vmatprep.subr.bf16.mxu0 0
    %1966 = vmatpush1.bf16.msra.mxu0 %v1894
    %1967 = vmatprep.subr.bf16.mxu0 0
    %1968 = vmatpush1.bf16.msra.mxu0 %v1891
    %1969 = vmatprep.subr.bf16.mxu0 0
    %1970 = vmatpush1.bf16.msra.mxu0 %v1888
    %1971 = vmatprep.subr.bf16.mxu0 0
    %1972 = vmatpush1.bf16.msra.mxu0 %v1885
    %1973 = vmatprep.subr.bf16.mxu0 0
    %1974 = vmatpush1.bf16.msra.mxu0 %v1882
    %1975 = vmatprep.subr.bf16.mxu0 0
    %1976 = vmatpush1.bf16.msra.mxu0 %v1879
    %1977 = vmatprep.subr.bf16.mxu0 0
    %1978 = vmatpush1.bf16.msra.mxu0 %v1876
    %1979 = vmatprep.subr.bf16.mxu0 0
    %1980 = vmatpush2.bf16.msra.mxu0 0
    %1981 = vmatprep.subr.bf16.mxu0 0
    %1982 = vmatpush2.bf16.msra.mxu0 0
    %1983 = vmatprep.subr.bf16.mxu0 0
    %1984 = vmatpush2.bf16.msra.mxu0 0
    %1985 = vmatprep.subr.bf16.mxu0 0
    %1986 = vmatpush2.bf16.msra.mxu0 0
    %1987 = vmatprep.subr.bf16.mxu0 0
    %1988 = vmatpush2.bf16.msra.mxu0 0
    %1989 = vmatprep.subr.bf16.mxu0 0
    %1990 = vmatpush2.bf16.msra.mxu0 0
    %1991 = vmatprep.subr.bf16.mxu0 0
    %1992 = vmatpush2.bf16.msra.mxu0 0
    %1993 = vmatprep.subr.bf16.mxu0 0
    %1994 = vmatpush2.bf16.msra.mxu0 0
    %1995 = vmatprep.mubr.bf16.mxu0 0
    %1996 = vmatmul.mubr.bf16.gmra.mxu0 %v1744
    %v1997 = vpop.f32.mrf.mxu0
    %v1998 = vadd.f32 %v1790, %v1997
    %v1999 = vpop.f32.mrf.mxu0
    %v2000 = vpop.f32.mrf.mxu0
    %v2001 = vpop.f32.mrf.mxu0
    %2002 = vdwg.mxu0
    %v2003 = vsub.f32 0.0, %v1957
    %v2004 = vsub.f32 0.0, %v1959
    %v2005 = vsub.f32 0.0, %v1998
    %v2006 = vmul.f32 %v2003, 1.442695
    %v2007 = vpow.pop %v2006
    %v2008 = vmul.f32 %v2004, 1.442695
    %v2009 = vpow.pop %v2008
    %v2010 = vmul.f32 %v2005, 1.442695
    %v2011 = vpow.pop %v2010
    %v2012 = vadd.f32 %v2007, 1.0
    %v2013 = vadd.f32 %v2009, 1.0
    %v2014 = vadd.f32 %v2011, 1.0
    %v2015 = vrcp.pop %v2012
    %v2016 = vrcp.pop %v2013
    %v2017 = vrcp.pop %v2014
    %2018 = vst [vmem:[%s7] sm:$0xff] %v2015
    %2019 = vst [vmem:[%s7 + $0x8] sm:$0xff] %v2016
    %2020 = vst [vmem:[%s7 + $0x10] sm:$0xff] %v2017
    // Predicated region
    $region38: #{amphib_forward.1} parent=1 // pred_check
      _
    $region39: #{amphib_forward.1} parent=1 // pred_check_branch
      %2022 = sbr.rel (0) target = $region41
    $region40: #{amphib_forward.1} parent=1 // pred_region
      _
    $region41: #{amphib_forward.1} parent=1 // pred_fallthru
      _
    // Predicated region
    $region42: #{amphib_forward.1} parent=1 // pred_check
      _
    $region43: #{amphib_forward.1} parent=1 // pred_check_branch
      %2024 = sbr.rel (0) target = $region45
    $region44: #{amphib_forward.1} parent=1 // pred_region
      _
    $region45: #{amphib_forward.1} parent=1 // pred_fallthru
      _
    // Predicated region
    $region46: #{amphib_forward.1} parent=1 // pred_check
      _
    $region47: #{amphib_forward.1} parent=1 // pred_check_branch
      %2026 = sbr.rel (0) target = $region49
    $region48: #{amphib_forward.1} parent=1 // pred_region
      _
    $region49: #{amphib_forward.1} parent=1 // pred_fallthru
      _
    // Predicated region
    $region50: #{amphib_forward.1} parent=1 // pred_check
      _
    $region51: #{amphib_forward.1} parent=1 // pred_check_branch
      %2028 = sbr.rel (0) target = $region53
    $region52: #{amphib_forward.1} parent=1 // pred_region
      _
    $region53: #{amphib_forward.1} parent=1 // pred_fallthru
      _
    %2029 = vsyncpa [#allocation3], 1
    %2030 = vsyncpa [#allocation5], 1

</llo_original>
